<compile_context>
chip_gen: v7x
topology: tpu7x:2x2x1
jax: 0.10.0
libtpu: 0.0.40
codegen_flags: <defaults>
</compile_context>

<pallas_src>
import jax
import jax.numpy as jnp
from jax import lax
from jax.experimental import pallas as pl
from jax.experimental.pallas import tpu as pltpu

RNN_LAYERS = 1  # CONFIG.MODEL.DECODER.RNN_LAYER assumed == 1


def _classifier_kernel(x_ref, act_ref, w_ref, out_ref, gx_scr, traj_scr):
    T, E = x_ref.shape
    G = gx_scr.shape[1]          # 4*H : fused (i,f,g,o) gate lane width
    H = G // 4

    # ---- hoisted input projection with the gate bias folded in (review #1 / #3) ----
    wih = w_ref[0:E, :]                        # (E, 4H)   fused W_ih^T
    b_f = w_ref[E + G:E + G + 1, :]            # (1, 4H)   b_ih + b_hh
    gx_scr[...] = (jnp.dot(x_ref[...], wih, preferred_element_type=jnp.float32) + b_f)

    # Fused recurrent weights: rows [0,H) = W_hh^T, rows [H,4H) are exact zeros, so the
    # don't-care lanes (>= H) of the 4H-wide state never contribute to the matmul.
    whh = w_ref[E:E + G, :]                    # (4H, 4H)

    h = jnp.zeros((1, G), jnp.float32)         # true state in lanes [0,H); lanes >= H carry
    c = jnp.zeros((1, G), jnp.float32)         #   bounded don't-care values (never read).

    # ---- serial recurrence: one lane-dense MXU push per step, h/c in vregs (review #2) ----
    for t in range(T):                         # static unroll (T small & known at trace time)
        pre = gx_scr[pl.ds(t, 1), :] + jnp.dot(h, whh, preferred_element_type=jnp.float32)
        sig = jax.nn.sigmoid(pre)              # one full-width EUP pass: [si | sf | sg | so]
        tnh = jnp.tanh(pre)                    # one full-width EUP pass: [.. | .. | tg | ..]
        # gate alignment via XLU rolls (np.roll semantics): bring each gate to lanes [0,H)
        f_al = pltpu.roll(sig, G - H, axis=1)        # sigma_f -> lanes [0,H)
        g_al = pltpu.roll(tnh, G - 2 * H, axis=1)    # tanh_g  -> lanes [0,H)
        o_al = pltpu.roll(sig, G - 3 * H, axis=1)    # sigma_o -> lanes [0,H)
        c = f_al * c + sig * g_al              # sigma_i already sits in lanes [0,H)
        h = o_al * jnp.tanh(c)
        traj_scr[pl.ds(t, 1), :] = h           # hidden-state trajectory (lanes >= H unused)
    # TODO(synk): v5e follow-up - keep the fused W_hh resident in MXU weight registers across
    # the unrolled steps via pltpu.matmul_push_rhs / matmul_acc_lhs / matmul_pop.

    # ---- collapsed, activation-free 2-layer MLP (review #4), lane-dense (1,T) output ----
    vh = w_ref[E + G + 1:E + G + 2, :]         # (1, 4H): v_h in lanes [0,H), zeros elsewhere
    va = w_ref[E + G + 2:E + G + 3, :]         # (1, 4H): v_a in lanes [0,A), zeros elsewhere
    b_eff = w_ref[E + G + 3:E + G + 4, 0:1]    # (1, 1)
    dn = (((1,), (1,)), ((), ()))
    score = (lax.dot_general(vh, traj_scr[...], dn, preferred_element_type=jnp.float32)
             + lax.dot_general(va, act_ref[...], dn, preferred_element_type=jnp.float32)
             + b_eff)                          # (1, T)
    out_ref[...] = jax.nn.sigmoid(score)


def prepare_params(params):
    """One-time repack of PyTorch-layout weights into one lane-dense kernel slab."""
    H = params["w_hh"].shape[1]
    E = params["w_ih"].shape[1]
    G = 4 * H
    A = params["w1"].shape[1] - H
    if not (1 <= A <= G):
        raise ValueError("action_class_num must fit inside the fused 4H lane width")

    w_ih = params["w_ih"].astype(jnp.float32)                      # (4H, E), gate order i,f,g,o
    w_hh = params["w_hh"].astype(jnp.float32)                      # (4H, H)
    b_f = (params["b_ih"] + params["b_hh"]).astype(jnp.float32)    # (4H,)

    # Collapse the activation-free MLP:  score = [h | act] @ (w2 @ w1)^T + (w2 @ b1 + b2)
    w1 = params["w1"].astype(jnp.float32)
    w2 = params["w2"].astype(jnp.float32)
    v = w2 @ w1                                                    # (1, H + A)
    b_eff = w2 @ params["b1"].astype(jnp.float32) + params["b2"].astype(jnp.float32)  # (1,)

    rows = E + G + 4
    slab = jnp.zeros((rows, G), jnp.float32)
    slab = slab.at[0:E, :].set(w_ih.T)                 # fused input projection   (E, 4H)
    slab = slab.at[E:E + H, :].set(w_hh.T)             # fused recurrent weights  (H, 4H);
    #                                                    rows [E+H, E+G) stay exact zeros.
    slab = slab.at[E + G, :].set(b_f)                  # fused gate bias          (1, 4H)
    slab = slab.at[E + G + 1, :H].set(v[0, :H])        # collapsed-MLP hidden vec (padded w/ 0)
    slab = slab.at[E + G + 2, :A].set(v[0, H:])        # collapsed-MLP action vec (padded w/ 0)
    slab = slab.at[E + G + 3, 0].set(b_eff[0])         # collapsed-MLP bias
    return {"slab": slab, "E": E, "H": H, "A": A}


def baseline_classifier(seq_emb_frame, action_class_one_hot, kp):
    """Pallas forward pass.  Returns shape (T,) float32, T = seq_emb_frame.shape[0]."""
    T, B, E = seq_emb_frame.shape
    H, A = kp["H"], kp["A"]
    G = 4 * H
    slab = kp["slab"]

    # review #6: let the BlockSpec DMA only batch row B-1 directly from HBM.  Viewing the
    # contiguous (T,B,E) array as (T, B*E) is a free bitcast; the row lives in the aligned
    # lane window [(B-1)*E, B*E) when E is a lane multiple.
    if E % 128 == 0:
        x_in = seq_emb_frame.reshape(T, B * E).astype(jnp.float32)
        x_spec = pl.BlockSpec((T, E), lambda i: (0, B - 1))
    else:  # fallback for non-lane-aligned embed dims: tiny wrapper slice
        x_in = seq_emb_frame[:, B - 1, :].astype(jnp.float32)
        x_spec = pl.BlockSpec((T, E), lambda i: (0, 0))

    # action one-hot, broadcast over the LSTM batch, padded to the fused lane width so the
    # MLP contraction needs no sub-lane slicing (padding lanes meet zeros in the slab).
    act = action_class_one_hot.reshape(T, A).astype(jnp.float32)
    act = jnp.pad(act, ((0, 0), (0, G - A)))                        # (T, 4H)

    out = pl.pallas_call(
        _classifier_kernel,
        out_shape=jax.ShapeDtypeStruct((1, T), jnp.float32),        # lane-dense score row
        grid=(1,),
        in_specs=[
            x_spec,
            pl.BlockSpec((T, G), lambda i: (0, 0)),
            pl.BlockSpec(slab.shape, lambda i: (0, 0)),
        ],
        out_specs=pl.BlockSpec((1, T), lambda i: (0, 0)),
        scratch_shapes=[
            pltpu.VMEM((T, G), jnp.float32),      # hoisted x@Wih + bias (all gates, fused)
            pltpu.VMEM((T, G), jnp.float32),      # lstm hidden-state trajectory
        ],
        compiler_params=pltpu.CompilerParams(dimension_semantics=("arbitrary",)),
    )(x_in, act, slab)
    return out[0]


def reference(seq, act, p):
    """Pure-JAX reference reproducing the PyTorch forward exactly."""
    T, B, _ = seq.shape
    H = p["w_hh"].shape[1]

    def lstm_step(carry, x_t):
        h, c = carry
        gates = x_t @ p["w_ih"].T + h @ p["w_hh"].T + p["b_ih"] + p["b_hh"]
        i = jax.nn.sigmoid(gates[:, :H])
        f = jax.nn.sigmoid(gates[:, H:2 * H])
        g = jnp.tanh(gates[:, 2 * H:3 * H])
        o = jax.nn.sigmoid(gates[:, 3 * H:])
        c = f * c + i * g
        h = o * jnp.tanh(c)
        return (h, c), h

    init = (jnp.zeros((B, H), jnp.float32), jnp.zeros((B, H), jnp.float32))
    _, lstm_out = lax.scan(lstm_step, init, seq)                   # (T, B, H)
    act_seq = jnp.repeat(act.astype(jnp.float32), B, axis=1)       # (T, B, A)
    x = jnp.concatenate([lstm_out, act_seq], axis=2)
    z1 = x @ p["w1"].T + p["b1"]
    score = (z1 @ p["w2"].T + p["b2"])[..., 0]                     # (T, B)
    return jax.nn.sigmoid(score[:, -1])                            # use_mean=False


def init_params(key, embed_dim, hidden_dim, action_class_num):
    ks = jax.random.split(key, 8)
    H, E, A = hidden_dim, embed_dim, action_class_num
    s = 0.1
    return {
        "w_ih": jax.random.normal(ks[0], (4 * H, E), jnp.float32) * s,
        "w_hh": jax.random.normal(ks[1], (4 * H, H), jnp.float32) * s,
        "b_ih": jax.random.normal(ks[2], (4 * H,), jnp.float32) * s,
        "b_hh": jax.random.normal(ks[3], (4 * H,), jnp.float32) * s,
        "w1": jax.random.normal(ks[4], (H, H + A), jnp.float32) * s,   # Linear(H+A -> H)
        "b1": jax.random.normal(ks[5], (H,), jnp.float32) * s,
        "w2": jax.random.normal(ks[6], (1, H), jnp.float32) * s,       # Linear(H -> 1)
        "b2": jax.random.normal(ks[7], (1,), jnp.float32) * s,
    }


if __name__ == "__main__":
    T, B = 16, 6                 # seq_emb_frame dims 0 (time) and 1 (LSTM batch)
    embed_dim, hidden_dim, action_class_num = 128, 32, 1

    key = jax.random.PRNGKey(0)
    k_x, k_p = jax.random.split(key)
    seq_emb_frame = jax.random.normal(k_x, (T, B, embed_dim), jnp.float32)
    # action_class_num == 1 -> the one-hot is just 1.0
    action_class_one_hot = jnp.ones((T, 1, action_class_num), jnp.float32)

    params = init_params(k_p, embed_dim, hidden_dim, action_class_num)
    kparams = prepare_params(params)     # repack once, outside the call path (review #5)

    out = jax.block_until_ready(
        baseline_classifier(seq_emb_frame, action_class_one_hot, kparams))
    ref = jax.block_until_ready(reference(seq_emb_frame, action_class_one_hot, params))

    assert out.shape == (T,)
    assert jnp.allclose(out, ref, atol=5e-4), (out, ref)
    print("KERNEL_OK")
</pallas_src>

<mosaic_0001>
module attributes {stable_mosaic.version = 11 : i64} {
  func.func @_classifier_kernel(%arg0: i32, %arg1: memref<16x128xf32, #tpu.memory_space<vmem>>, %arg2: memref<16x128xf32, #tpu.memory_space<vmem>>, %arg3: memref<260x128xf32, #tpu.memory_space<vmem>>, %arg4: memref<1x16xf32, #tpu.memory_space<vmem>>, %arg5: memref<16x128xf32, #tpu.memory_space<vmem>>, %arg6: memref<16x128xf32, #tpu.memory_space<vmem>>) attributes {dimension_semantics = [#tpu.dimension_semantics<arbitrary>], iteration_bounds = array<i64: 1>, scalar_prefetch = 0 : i64, scratch_operands = 2 : i64, tpu.core_type = #tpu.core_type<tc>, window_params = [{transform_indices = @transform_0, window_bounds = array<i64: 16, 128>}, {pipeline_mode = #tpu.pipeline_mode<synchronous>, transform_indices = @transform_1, window_bounds = array<i64: 16, 128>}, {pipeline_mode = #tpu.pipeline_mode<synchronous>, transform_indices = @transform_2, window_bounds = array<i64: 260, 128>}, {pipeline_mode = #tpu.pipeline_mode<synchronous>, transform_indices = @transform_3, window_bounds = array<i64: 1, 16>}]} {
    %c0 = arith.constant 0 : index
    %c0_0 = arith.constant 0 : index
    %0 = vector.load %arg3[%c0, %c0_0] : memref<260x128xf32, #tpu.memory_space<vmem>>, vector<128x128xf32>
    %c256 = arith.constant 256 : index
    %c0_1 = arith.constant 0 : index
    %1 = vector.load %arg3[%c256, %c0_1] : memref<260x128xf32, #tpu.memory_space<vmem>>, vector<1x128xf32>
    %c0_2 = arith.constant 0 : index
    %c0_3 = arith.constant 0 : index
    %2 = vector.load %arg1[%c0_2, %c0_3] : memref<16x128xf32, #tpu.memory_space<vmem>>, vector<16x128xf32>
    %cst = arith.constant dense<0.000000e+00> : vector<16x128xf32>
    %3 = tpu.matmul %2, %0, %cst {dimension_numbers = #tpu.dot_dimension_numbers<[1], [0], [0], [1], [0, 0, 1, 1], [], []>} : vector<16x128xf32>, vector<128x128xf32>, vector<16x128xf32> -> vector<16x128xf32>
    %4 = vector.broadcast %1 : vector<1x128xf32> to vector<16x128xf32>
    %5 = arith.addf %3, %4 : vector<16x128xf32>
    %c0_4 = arith.constant 0 : index
    %c0_5 = arith.constant 0 : index
    %6 = vector.load %arg5[%c0_4, %c0_5] : memref<16x128xf32, #tpu.memory_space<vmem>>, vector<16x128xf32>
    tpu.vector_store %arg5[%c0_4, %c0_5], %5 {strides = array<i32>} : memref<16x128xf32, #tpu.memory_space<vmem>>, vector<16x128xf32>,
    %c128 = arith.constant 128 : index
    %c0_6 = arith.constant 0 : index
    %7 = vector.load %arg3[%c128, %c0_6] : memref<260x128xf32, #tpu.memory_space<vmem>>, vector<128x128xf32>
    %cst_7 = arith.constant 0.000000e+00 : f32
    %8 = vector.broadcast %cst_7 : f32 to vector<1x128xf32>
    %cst_8 = arith.constant 0.000000e+00 : f32
    %9 = vector.broadcast %cst_8 : f32 to vector<1x128xf32>
    %c0_9 = arith.constant 0 : index
    %c0_10 = arith.constant 0 : index
    %10 = vector.load %arg5[%c0_9, %c0_10] : memref<16x128xf32, #tpu.memory_space<vmem>>, vector<1x128xf32>
    %cst_11 = arith.constant dense<0.000000e+00> : vector<1x128xf32>
    %11 = tpu.matmul %8, %7, %cst_11 {dimension_numbers = #tpu.dot_dimension_numbers<[1], [0], [0], [1], [0, 0, 1, 1], [], []>} : vector<1x128xf32>, vector<128x128xf32>, vector<1x128xf32> -> vector<1x128xf32>
    %12 = arith.addf %10, %11 : vector<1x128xf32>
    %13 = arith.negf %12 : vector<1x128xf32>
    %14 = math.exp %13 : vector<1x128xf32>
    %cst_12 = arith.constant 1.000000e+00 : f32
    %15 = vector.broadcast %cst_12 : f32 to vector<1x128xf32>
    %16 = arith.addf %15, %14 : vector<1x128xf32>
    %17 = arith.divf %15, %16 : vector<1x128xf32>
    %18 = math.tanh %12 : vector<1x128xf32>
    %c96_i32 = arith.constant 96 : i32
    %19 = tpu.dynamic_rotate %17 by %c96_i32 dim 1 : vector<1x128xf32>, i32 -> vector<1x128xf32>
    %c64_i32 = arith.constant 64 : i32
    %20 = tpu.dynamic_rotate %18 by %c64_i32 dim 1 : vector<1x128xf32>, i32 -> vector<1x128xf32>
    %c32_i32 = arith.constant 32 : i32
    %21 = tpu.dynamic_rotate %17 by %c32_i32 dim 1 : vector<1x128xf32>, i32 -> vector<1x128xf32>
    %22 = arith.mulf %19, %9 : vector<1x128xf32>
    %23 = arith.mulf %17, %20 : vector<1x128xf32>
    %24 = arith.addf %22, %23 : vector<1x128xf32>
    %25 = math.tanh %24 : vector<1x128xf32>
    %26 = arith.mulf %21, %25 : vector<1x128xf32>
    %c0_13 = arith.constant 0 : index
    %c0_14 = arith.constant 0 : index
    %27 = vector.load %arg6[%c0_13, %c0_14] : memref<16x128xf32, #tpu.memory_space<vmem>>, vector<1x128xf32>
    tpu.vector_store %arg6[%c0_13, %c0_14], %26 {strides = array<i32>} : memref<16x128xf32, #tpu.memory_space<vmem>>, vector<1x128xf32>,
    %c1 = arith.constant 1 : index
    %c0_15 = arith.constant 0 : index
    %28 = vector.load %arg5[%c1, %c0_15] : memref<16x128xf32, #tpu.memory_space<vmem>>, vector<1x128xf32>
    %cst_16 = arith.constant dense<0.000000e+00> : vector<1x128xf32>
    %29 = tpu.matmul %26, %7, %cst_16 {dimension_numbers = #tpu.dot_dimension_numbers<[1], [0], [0], [1], [0, 0, 1, 1], [], []>} : vector<1x128xf32>, vector<128x128xf32>, vector<1x128xf32> -> vector<1x128xf32>
    %30 = arith.addf %28, %29 : vector<1x128xf32>
    %31 = arith.negf %30 : vector<1x128xf32>
    %32 = math.exp %31 : vector<1x128xf32>
    %cst_17 = arith.constant 1.000000e+00 : f32
    %33 = vector.broadcast %cst_17 : f32 to vector<1x128xf32>
    %34 = arith.addf %33, %32 : vector<1x128xf32>
    %35 = arith.divf %33, %34 : vector<1x128xf32>
    %36 = math.tanh %30 : vector<1x128xf32>
    %c96_i32_18 = arith.constant 96 : i32
    %37 = tpu.dynamic_rotate %35 by %c96_i32_18 dim 1 : vector<1x128xf32>, i32 -> vector<1x128xf32>
    %c64_i32_19 = arith.constant 64 : i32
    %38 = tpu.dynamic_rotate %36 by %c64_i32_19 dim 1 : vector<1x128xf32>, i32 -> vector<1x128xf32>
    %c32_i32_20 = arith.constant 32 : i32
    %39 = tpu.dynamic_rotate %35 by %c32_i32_20 dim 1 : vector<1x128xf32>, i32 -> vector<1x128xf32>
    %40 = arith.mulf %37, %24 : vector<1x128xf32>
    %41 = arith.mulf %35, %38 : vector<1x128xf32>
    %42 = arith.addf %40, %41 : vector<1x128xf32>
    %43 = math.tanh %42 : vector<1x128xf32>
    %44 = arith.mulf %39, %43 : vector<1x128xf32>
    %c1_21 = arith.constant 1 : index
    %c0_22 = arith.constant 0 : index
    %45 = vector.load %arg6[%c1_21, %c0_22] : memref<16x128xf32, #tpu.memory_space<vmem>>, vector<1x128xf32>
    tpu.vector_store %arg6[%c1_21, %c0_22], %44 {strides = array<i32>} : memref<16x128xf32, #tpu.memory_space<vmem>>, vector<1x128xf32>,
    %c2 = arith.constant 2 : index
    %c0_23 = arith.constant 0 : index
    %46 = vector.load %arg5[%c2, %c0_23] : memref<16x128xf32, #tpu.memory_space<vmem>>, vector<1x128xf32>
    %cst_24 = arith.constant dense<0.000000e+00> : vector<1x128xf32>
    %47 = tpu.matmul %44, %7, %cst_24 {dimension_numbers = #tpu.dot_dimension_numbers<[1], [0], [0], [1], [0, 0, 1, 1], [], []>} : vector<1x128xf32>, vector<128x128xf32>, vector<1x128xf32> -> vector<1x128xf32>
    %48 = arith.addf %46, %47 : vector<1x128xf32>
    %49 = arith.negf %48 : vector<1x128xf32>
    %50 = math.exp %49 : vector<1x128xf32>
    %cst_25 = arith.constant 1.000000e+00 : f32
    %51 = vector.broadcast %cst_25 : f32 to vector<1x128xf32>
    %52 = arith.addf %51, %50 : vector<1x128xf32>
    %53 = arith.divf %51, %52 : vector<1x128xf32>
    %54 = math.tanh %48 : vector<1x128xf32>
    %c96_i32_26 = arith.constant 96 : i32
    %55 = tpu.dynamic_rotate %53 by %c96_i32_26 dim 1 : vector<1x128xf32>, i32 -> vector<1x128xf32>
    %c64_i32_27 = arith.constant 64 : i32
    %56 = tpu.dynamic_rotate %54 by %c64_i32_27 dim 1 : vector<1x128xf32>, i32 -> vector<1x128xf32>
    %c32_i32_28 = arith.constant 32 : i32
    %57 = tpu.dynamic_rotate %53 by %c32_i32_28 dim 1 : vector<1x128xf32>, i32 -> vector<1x128xf32>
    %58 = arith.mulf %55, %42 : vector<1x128xf32>
    %59 = arith.mulf %53, %56 : vector<1x128xf32>
    %60 = arith.addf %58, %59 : vector<1x128xf32>
    %61 = math.tanh %60 : vector<1x128xf32>
    %62 = arith.mulf %57, %61 : vector<1x128xf32>
    %c2_29 = arith.constant 2 : index
    %c0_30 = arith.constant 0 : index
    %63 = vector.load %arg6[%c2_29, %c0_30] : memref<16x128xf32, #tpu.memory_space<vmem>>, vector<1x128xf32>
    tpu.vector_store %arg6[%c2_29, %c0_30], %62 {strides = array<i32>} : memref<16x128xf32, #tpu.memory_space<vmem>>, vector<1x128xf32>,
    %c3 = arith.constant 3 : index
    %c0_31 = arith.constant 0 : index
    %64 = vector.load %arg5[%c3, %c0_31] : memref<16x128xf32, #tpu.memory_space<vmem>>, vector<1x128xf32>
    %cst_32 = arith.constant dense<0.000000e+00> : vector<1x128xf32>
    %65 = tpu.matmul %62, %7, %cst_32 {dimension_numbers = #tpu.dot_dimension_numbers<[1], [0], [0], [1], [0, 0, 1, 1], [], []>} : vector<1x128xf32>, vector<128x128xf32>, vector<1x128xf32> -> vector<1x128xf32>
    %66 = arith.addf %64, %65 : vector<1x128xf32>
    %67 = arith.negf %66 : vector<1x128xf32>
    %68 = math.exp %67 : vector<1x128xf32>
    %cst_33 = arith.constant 1.000000e+00 : f32
    %69 = vector.broadcast %cst_33 : f32 to vector<1x128xf32>
    %70 = arith.addf %69, %68 : vector<1x128xf32>
    %71 = arith.divf %69, %70 : vector<1x128xf32>
    %72 = math.tanh %66 : vector<1x128xf32>
    %c96_i32_34 = arith.constant 96 : i32
    %73 = tpu.dynamic_rotate %71 by %c96_i32_34 dim 1 : vector<1x128xf32>, i32 -> vector<1x128xf32>
    %c64_i32_35 = arith.constant 64 : i32
    %74 = tpu.dynamic_rotate %72 by %c64_i32_35 dim 1 : vector<1x128xf32>, i32 -> vector<1x128xf32>
    %c32_i32_36 = arith.constant 32 : i32
    %75 = tpu.dynamic_rotate %71 by %c32_i32_36 dim 1 : vector<1x128xf32>, i32 -> vector<1x128xf32>
    %76 = arith.mulf %73, %60 : vector<1x128xf32>
    %77 = arith.mulf %71, %74 : vector<1x128xf32>
    %78 = arith.addf %76, %77 : vector<1x128xf32>
    %79 = math.tanh %78 : vector<1x128xf32>
    %80 = arith.mulf %75, %79 : vector<1x128xf32>
    %c3_37 = arith.constant 3 : index
    %c0_38 = arith.constant 0 : index
    %81 = vector.load %arg6[%c3_37, %c0_38] : memref<16x128xf32, #tpu.memory_space<vmem>>, vector<1x128xf32>
    tpu.vector_store %arg6[%c3_37, %c0_38], %80 {strides = array<i32>} : memref<16x128xf32, #tpu.memory_space<vmem>>, vector<1x128xf32>,
    %c4 = arith.constant 4 : index
    %c0_39 = arith.constant 0 : index
    %82 = vector.load %arg5[%c4, %c0_39] : memref<16x128xf32, #tpu.memory_space<vmem>>, vector<1x128xf32>
    %cst_40 = arith.constant dense<0.000000e+00> : vector<1x128xf32>
    %83 = tpu.matmul %80, %7, %cst_40 {dimension_numbers = #tpu.dot_dimension_numbers<[1], [0], [0], [1], [0, 0, 1, 1], [], []>} : vector<1x128xf32>, vector<128x128xf32>, vector<1x128xf32> -> vector<1x128xf32>
    %84 = arith.addf %82, %83 : vector<1x128xf32>
    %85 = arith.negf %84 : vector<1x128xf32>
    %86 = math.exp %85 : vector<1x128xf32>
    %cst_41 = arith.constant 1.000000e+00 : f32
    %87 = vector.broadcast %cst_41 : f32 to vector<1x128xf32>
    %88 = arith.addf %87, %86 : vector<1x128xf32>
    %89 = arith.divf %87, %88 : vector<1x128xf32>
    %90 = math.tanh %84 : vector<1x128xf32>
    %c96_i32_42 = arith.constant 96 : i32
    %91 = tpu.dynamic_rotate %89 by %c96_i32_42 dim 1 : vector<1x128xf32>, i32 -> vector<1x128xf32>
    %c64_i32_43 = arith.constant 64 : i32
    %92 = tpu.dynamic_rotate %90 by %c64_i32_43 dim 1 : vector<1x128xf32>, i32 -> vector<1x128xf32>
    %c32_i32_44 = arith.constant 32 : i32
    %93 = tpu.dynamic_rotate %89 by %c32_i32_44 dim 1 : vector<1x128xf32>, i32 -> vector<1x128xf32>
    %94 = arith.mulf %91, %78 : vector<1x128xf32>
    %95 = arith.mulf %89, %92 : vector<1x128xf32>
    %96 = arith.addf %94, %95 : vector<1x128xf32>
    %97 = math.tanh %96 : vector<1x128xf32>
    %98 = arith.mulf %93, %97 : vector<1x128xf32>
    %c4_45 = arith.constant 4 : index
    %c0_46 = arith.constant 0 : index
    %99 = vector.load %arg6[%c4_45, %c0_46] : memref<16x128xf32, #tpu.memory_space<vmem>>, vector<1x128xf32>
    tpu.vector_store %arg6[%c4_45, %c0_46], %98 {strides = array<i32>} : memref<16x128xf32, #tpu.memory_space<vmem>>, vector<1x128xf32>,
    %c5 = arith.constant 5 : index
    %c0_47 = arith.constant 0 : index
    %100 = vector.load %arg5[%c5, %c0_47] : memref<16x128xf32, #tpu.memory_space<vmem>>, vector<1x128xf32>
    %cst_48 = arith.constant dense<0.000000e+00> : vector<1x128xf32>
    %101 = tpu.matmul %98, %7, %cst_48 {dimension_numbers = #tpu.dot_dimension_numbers<[1], [0], [0], [1], [0, 0, 1, 1], [], []>} : vector<1x128xf32>, vector<128x128xf32>, vector<1x128xf32> -> vector<1x128xf32>
    %102 = arith.addf %100, %101 : vector<1x128xf32>
    %103 = arith.negf %102 : vector<1x128xf32>
    %104 = math.exp %103 : vector<1x128xf32>
    %cst_49 = arith.constant 1.000000e+00 : f32
    %105 = vector.broadcast %cst_49 : f32 to vector<1x128xf32>
    %106 = arith.addf %105, %104 : vector<1x128xf32>
    %107 = arith.divf %105, %106 : vector<1x128xf32>
    %108 = math.tanh %102 : vector<1x128xf32>
    %c96_i32_50 = arith.constant 96 : i32
    %109 = tpu.dynamic_rotate %107 by %c96_i32_50 dim 1 : vector<1x128xf32>, i32 -> vector<1x128xf32>
    %c64_i32_51 = arith.constant 64 : i32
    %110 = tpu.dynamic_rotate %108 by %c64_i32_51 dim 1 : vector<1x128xf32>, i32 -> vector<1x128xf32>
    %c32_i32_52 = arith.constant 32 : i32
    %111 = tpu.dynamic_rotate %107 by %c32_i32_52 dim 1 : vector<1x128xf32>, i32 -> vector<1x128xf32>
    %112 = arith.mulf %109, %96 : vector<1x128xf32>
    %113 = arith.mulf %107, %110 : vector<1x128xf32>
    %114 = arith.addf %112, %113 : vector<1x128xf32>
    %115 = math.tanh %114 : vector<1x128xf32>
    %116 = arith.mulf %111, %115 : vector<1x128xf32>
    %c5_53 = arith.constant 5 : index
    %c0_54 = arith.constant 0 : index
    %117 = vector.load %arg6[%c5_53, %c0_54] : memref<16x128xf32, #tpu.memory_space<vmem>>, vector<1x128xf32>
    tpu.vector_store %arg6[%c5_53, %c0_54], %116 {strides = array<i32>} : memref<16x128xf32, #tpu.memory_space<vmem>>, vector<1x128xf32>,
    %c6 = arith.constant 6 : index
    %c0_55 = arith.constant 0 : index
    %118 = vector.load %arg5[%c6, %c0_55] : memref<16x128xf32, #tpu.memory_space<vmem>>, vector<1x128xf32>
    %cst_56 = arith.constant dense<0.000000e+00> : vector<1x128xf32>
    %119 = tpu.matmul %116, %7, %cst_56 {dimension_numbers = #tpu.dot_dimension_numbers<[1], [0], [0], [1], [0, 0, 1, 1], [], []>} : vector<1x128xf32>, vector<128x128xf32>, vector<1x128xf32> -> vector<1x128xf32>
    %120 = arith.addf %118, %119 : vector<1x128xf32>
    %121 = arith.negf %120 : vector<1x128xf32>
    %122 = math.exp %121 : vector<1x128xf32>
    %cst_57 = arith.constant 1.000000e+00 : f32
    %123 = vector.broadcast %cst_57 : f32 to vector<1x128xf32>
    %124 = arith.addf %123, %122 : vector<1x128xf32>
    %125 = arith.divf %123, %124 : vector<1x128xf32>
    %126 = math.tanh %120 : vector<1x128xf32>
    %c96_i32_58 = arith.constant 96 : i32
    %127 = tpu.dynamic_rotate %125 by %c96_i32_58 dim 1 : vector<1x128xf32>, i32 -> vector<1x128xf32>
    %c64_i32_59 = arith.constant 64 : i32
    %128 = tpu.dynamic_rotate %126 by %c64_i32_59 dim 1 : vector<1x128xf32>, i32 -> vector<1x128xf32>
    %c32_i32_60 = arith.constant 32 : i32
    %129 = tpu.dynamic_rotate %125 by %c32_i32_60 dim 1 : vector<1x128xf32>, i32 -> vector<1x128xf32>
    %130 = arith.mulf %127, %114 : vector<1x128xf32>
    %131 = arith.mulf %125, %128 : vector<1x128xf32>
    %132 = arith.addf %130, %131 : vector<1x128xf32>
    %133 = math.tanh %132 : vector<1x128xf32>
    %134 = arith.mulf %129, %133 : vector<1x128xf32>
    %c6_61 = arith.constant 6 : index
    %c0_62 = arith.constant 0 : index
    %135 = vector.load %arg6[%c6_61, %c0_62] : memref<16x128xf32, #tpu.memory_space<vmem>>, vector<1x128xf32>
    tpu.vector_store %arg6[%c6_61, %c0_62], %134 {strides = array<i32>} : memref<16x128xf32, #tpu.memory_space<vmem>>, vector<1x128xf32>,
    %c7 = arith.constant 7 : index
    %c0_63 = arith.constant 0 : index
    %136 = vector.load %arg5[%c7, %c0_63] : memref<16x128xf32, #tpu.memory_space<vmem>>, vector<1x128xf32>
    %cst_64 = arith.constant dense<0.000000e+00> : vector<1x128xf32>
    %137 = tpu.matmul %134, %7, %cst_64 {dimension_numbers = #tpu.dot_dimension_numbers<[1], [0], [0], [1], [0, 0, 1, 1], [], []>} : vector<1x128xf32>, vector<128x128xf32>, vector<1x128xf32> -> vector<1x128xf32>
    %138 = arith.addf %136, %137 : vector<1x128xf32>
    %139 = arith.negf %138 : vector<1x128xf32>
    %140 = math.exp %139 : vector<1x128xf32>
    %cst_65 = arith.constant 1.000000e+00 : f32
    %141 = vector.broadcast %cst_65 : f32 to vector<1x128xf32>
    %142 = arith.addf %141, %140 : vector<1x128xf32>
    %143 = arith.divf %141, %142 : vector<1x128xf32>
    %144 = math.tanh %138 : vector<1x128xf32>
    %c96_i32_66 = arith.constant 96 : i32
    %145 = tpu.dynamic_rotate %143 by %c96_i32_66 dim 1 : vector<1x128xf32>, i32 -> vector<1x128xf32>
    %c64_i32_67 = arith.constant 64 : i32
    %146 = tpu.dynamic_rotate %144 by %c64_i32_67 dim 1 : vector<1x128xf32>, i32 -> vector<1x128xf32>
    %c32_i32_68 = arith.constant 32 : i32
    %147 = tpu.dynamic_rotate %143 by %c32_i32_68 dim 1 : vector<1x128xf32>, i32 -> vector<1x128xf32>
    %148 = arith.mulf %145, %132 : vector<1x128xf32>
    %149 = arith.mulf %143, %146 : vector<1x128xf32>
    %150 = arith.addf %148, %149 : vector<1x128xf32>
    %151 = math.tanh %150 : vector<1x128xf32>
    %152 = arith.mulf %147, %151 : vector<1x128xf32>
    %c7_69 = arith.constant 7 : index
    %c0_70 = arith.constant 0 : index
    %153 = vector.load %arg6[%c7_69, %c0_70] : memref<16x128xf32, #tpu.memory_space<vmem>>, vector<1x128xf32>
    tpu.vector_store %arg6[%c7_69, %c0_70], %152 {strides = array<i32>} : memref<16x128xf32, #tpu.memory_space<vmem>>, vector<1x128xf32>,
    %c8 = arith.constant 8 : index
    %c0_71 = arith.constant 0 : index
    %154 = vector.load %arg5[%c8, %c0_71] : memref<16x128xf32, #tpu.memory_space<vmem>>, vector<1x128xf32>
    %cst_72 = arith.constant dense<0.000000e+00> : vector<1x128xf32>
    %155 = tpu.matmul %152, %7, %cst_72 {dimension_numbers = #tpu.dot_dimension_numbers<[1], [0], [0], [1], [0, 0, 1, 1], [], []>} : vector<1x128xf32>, vector<128x128xf32>, vector<1x128xf32> -> vector<1x128xf32>
    %156 = arith.addf %154, %155 : vector<1x128xf32>
    %157 = arith.negf %156 : vector<1x128xf32>
    %158 = math.exp %157 : vector<1x128xf32>
    %cst_73 = arith.constant 1.000000e+00 : f32
    %159 = vector.broadcast %cst_73 : f32 to vector<1x128xf32>
    %160 = arith.addf %159, %158 : vector<1x128xf32>
    %161 = arith.divf %159, %160 : vector<1x128xf32>
    %162 = math.tanh %156 : vector<1x128xf32>
    %c96_i32_74 = arith.constant 96 : i32
    %163 = tpu.dynamic_rotate %161 by %c96_i32_74 dim 1 : vector<1x128xf32>, i32 -> vector<1x128xf32>
    %c64_i32_75 = arith.constant 64 : i32
    %164 = tpu.dynamic_rotate %162 by %c64_i32_75 dim 1 : vector<1x128xf32>, i32 -> vector<1x128xf32>
    %c32_i32_76 = arith.constant 32 : i32
    %165 = tpu.dynamic_rotate %161 by %c32_i32_76 dim 1 : vector<1x128xf32>, i32 -> vector<1x128xf32>
    %166 = arith.mulf %163, %150 : vector<1x128xf32>
    %167 = arith.mulf %161, %164 : vector<1x128xf32>
    %168 = arith.addf %166, %167 : vector<1x128xf32>
    %169 = math.tanh %168 : vector<1x128xf32>
    %170 = arith.mulf %165, %169 : vector<1x128xf32>
    %c8_77 = arith.constant 8 : index
    %c0_78 = arith.constant 0 : index
    %171 = vector.load %arg6[%c8_77, %c0_78] : memref<16x128xf32, #tpu.memory_space<vmem>>, vector<1x128xf32>
    tpu.vector_store %arg6[%c8_77, %c0_78], %170 {strides = array<i32>} : memref<16x128xf32, #tpu.memory_space<vmem>>, vector<1x128xf32>,
    %c9 = arith.constant 9 : index
    %c0_79 = arith.constant 0 : index
    %172 = vector.load %arg5[%c9, %c0_79] : memref<16x128xf32, #tpu.memory_space<vmem>>, vector<1x128xf32>
    %cst_80 = arith.constant dense<0.000000e+00> : vector<1x128xf32>
    %173 = tpu.matmul %170, %7, %cst_80 {dimension_numbers = #tpu.dot_dimension_numbers<[1], [0], [0], [1], [0, 0, 1, 1], [], []>} : vector<1x128xf32>, vector<128x128xf32>, vector<1x128xf32> -> vector<1x128xf32>
    %174 = arith.addf %172, %173 : vector<1x128xf32>
    %175 = arith.negf %174 : vector<1x128xf32>
    %176 = math.exp %175 : vector<1x128xf32>
    %cst_81 = arith.constant 1.000000e+00 : f32
    %177 = vector.broadcast %cst_81 : f32 to vector<1x128xf32>
    %178 = arith.addf %177, %176 : vector<1x128xf32>
    %179 = arith.divf %177, %178 : vector<1x128xf32>
    %180 = math.tanh %174 : vector<1x128xf32>
    %c96_i32_82 = arith.constant 96 : i32
    %181 = tpu.dynamic_rotate %179 by %c96_i32_82 dim 1 : vector<1x128xf32>, i32 -> vector<1x128xf32>
    %c64_i32_83 = arith.constant 64 : i32
    %182 = tpu.dynamic_rotate %180 by %c64_i32_83 dim 1 : vector<1x128xf32>, i32 -> vector<1x128xf32>
    %c32_i32_84 = arith.constant 32 : i32
    %183 = tpu.dynamic_rotate %179 by %c32_i32_84 dim 1 : vector<1x128xf32>, i32 -> vector<1x128xf32>
    %184 = arith.mulf %181, %168 : vector<1x128xf32>
    %185 = arith.mulf %179, %182 : vector<1x128xf32>
    %186 = arith.addf %184, %185 : vector<1x128xf32>
    %187 = math.tanh %186 : vector<1x128xf32>
    %188 = arith.mulf %183, %187 : vector<1x128xf32>
    %c9_85 = arith.constant 9 : index
    %c0_86 = arith.constant 0 : index
    %189 = vector.load %arg6[%c9_85, %c0_86] : memref<16x128xf32, #tpu.memory_space<vmem>>, vector<1x128xf32>
    tpu.vector_store %arg6[%c9_85, %c0_86], %188 {strides = array<i32>} : memref<16x128xf32, #tpu.memory_space<vmem>>, vector<1x128xf32>,
    %c10 = arith.constant 10 : index
    %c0_87 = arith.constant 0 : index
    %190 = vector.load %arg5[%c10, %c0_87] : memref<16x128xf32, #tpu.memory_space<vmem>>, vector<1x128xf32>
    %cst_88 = arith.constant dense<0.000000e+00> : vector<1x128xf32>
    %191 = tpu.matmul %188, %7, %cst_88 {dimension_numbers = #tpu.dot_dimension_numbers<[1], [0], [0], [1], [0, 0, 1, 1], [], []>} : vector<1x128xf32>, vector<128x128xf32>, vector<1x128xf32> -> vector<1x128xf32>
    %192 = arith.addf %190, %191 : vector<1x128xf32>
    %193 = arith.negf %192 : vector<1x128xf32>
    %194 = math.exp %193 : vector<1x128xf32>
    %cst_89 = arith.constant 1.000000e+00 : f32
    %195 = vector.broadcast %cst_89 : f32 to vector<1x128xf32>
    %196 = arith.addf %195, %194 : vector<1x128xf32>
    %197 = arith.divf %195, %196 : vector<1x128xf32>
    %198 = math.tanh %192 : vector<1x128xf32>
    %c96_i32_90 = arith.constant 96 : i32
    %199 = tpu.dynamic_rotate %197 by %c96_i32_90 dim 1 : vector<1x128xf32>, i32 -> vector<1x128xf32>
    %c64_i32_91 = arith.constant 64 : i32
    %200 = tpu.dynamic_rotate %198 by %c64_i32_91 dim 1 : vector<1x128xf32>, i32 -> vector<1x128xf32>
    %c32_i32_92 = arith.constant 32 : i32
    %201 = tpu.dynamic_rotate %197 by %c32_i32_92 dim 1 : vector<1x128xf32>, i32 -> vector<1x128xf32>
    %202 = arith.mulf %199, %186 : vector<1x128xf32>
    %203 = arith.mulf %197, %200 : vector<1x128xf32>
    %204 = arith.addf %202, %203 : vector<1x128xf32>
    %205 = math.tanh %204 : vector<1x128xf32>
    %206 = arith.mulf %201, %205 : vector<1x128xf32>
    %c10_93 = arith.constant 10 : index
    %c0_94 = arith.constant 0 : index
    %207 = vector.load %arg6[%c10_93, %c0_94] : memref<16x128xf32, #tpu.memory_space<vmem>>, vector<1x128xf32>
    tpu.vector_store %arg6[%c10_93, %c0_94], %206 {strides = array<i32>} : memref<16x128xf32, #tpu.memory_space<vmem>>, vector<1x128xf32>,
    %c11 = arith.constant 11 : index
    %c0_95 = arith.constant 0 : index
    %208 = vector.load %arg5[%c11, %c0_95] : memref<16x128xf32, #tpu.memory_space<vmem>>, vector<1x128xf32>
    %cst_96 = arith.constant dense<0.000000e+00> : vector<1x128xf32>
    %209 = tpu.matmul %206, %7, %cst_96 {dimension_numbers = #tpu.dot_dimension_numbers<[1], [0], [0], [1], [0, 0, 1, 1], [], []>} : vector<1x128xf32>, vector<128x128xf32>, vector<1x128xf32> -> vector<1x128xf32>
    %210 = arith.addf %208, %209 : vector<1x128xf32>
    %211 = arith.negf %210 : vector<1x128xf32>
    %212 = math.exp %211 : vector<1x128xf32>
    %cst_97 = arith.constant 1.000000e+00 : f32
    %213 = vector.broadcast %cst_97 : f32 to vector<1x128xf32>
    %214 = arith.addf %213, %212 : vector<1x128xf32>
    %215 = arith.divf %213, %214 : vector<1x128xf32>
    %216 = math.tanh %210 : vector<1x128xf32>
    %c96_i32_98 = arith.constant 96 : i32
    %217 = tpu.dynamic_rotate %215 by %c96_i32_98 dim 1 : vector<1x128xf32>, i32 -> vector<1x128xf32>
    %c64_i32_99 = arith.constant 64 : i32
    %218 = tpu.dynamic_rotate %216 by %c64_i32_99 dim 1 : vector<1x128xf32>, i32 -> vector<1x128xf32>
    %c32_i32_100 = arith.constant 32 : i32
    %219 = tpu.dynamic_rotate %215 by %c32_i32_100 dim 1 : vector<1x128xf32>, i32 -> vector<1x128xf32>
    %220 = arith.mulf %217, %204 : vector<1x128xf32>
    %221 = arith.mulf %215, %218 : vector<1x128xf32>
    %222 = arith.addf %220, %221 : vector<1x128xf32>
    %223 = math.tanh %222 : vector<1x128xf32>
    %224 = arith.mulf %219, %223 : vector<1x128xf32>
    %c11_101 = arith.constant 11 : index
    %c0_102 = arith.constant 0 : index
    %225 = vector.load %arg6[%c11_101, %c0_102] : memref<16x128xf32, #tpu.memory_space<vmem>>, vector<1x128xf32>
    tpu.vector_store %arg6[%c11_101, %c0_102], %224 {strides = array<i32>} : memref<16x128xf32, #tpu.memory_space<vmem>>, vector<1x128xf32>,
    %c12 = arith.constant 12 : index
    %c0_103 = arith.constant 0 : index
    %226 = vector.load %arg5[%c12, %c0_103] : memref<16x128xf32, #tpu.memory_space<vmem>>, vector<1x128xf32>
    %cst_104 = arith.constant dense<0.000000e+00> : vector<1x128xf32>
    %227 = tpu.matmul %224, %7, %cst_104 {dimension_numbers = #tpu.dot_dimension_numbers<[1], [0], [0], [1], [0, 0, 1, 1], [], []>} : vector<1x128xf32>, vector<128x128xf32>, vector<1x128xf32> -> vector<1x128xf32>
    %228 = arith.addf %226, %227 : vector<1x128xf32>
    %229 = arith.negf %228 : vector<1x128xf32>
    %230 = math.exp %229 : vector<1x128xf32>
    %cst_105 = arith.constant 1.000000e+00 : f32
    %231 = vector.broadcast %cst_105 : f32 to vector<1x128xf32>
    %232 = arith.addf %231, %230 : vector<1x128xf32>
    %233 = arith.divf %231, %232 : vector<1x128xf32>
    %234 = math.tanh %228 : vector<1x128xf32>
    %c96_i32_106 = arith.constant 96 : i32
    %235 = tpu.dynamic_rotate %233 by %c96_i32_106 dim 1 : vector<1x128xf32>, i32 -> vector<1x128xf32>
    %c64_i32_107 = arith.constant 64 : i32
    %236 = tpu.dynamic_rotate %234 by %c64_i32_107 dim 1 : vector<1x128xf32>, i32 -> vector<1x128xf32>
    %c32_i32_108 = arith.constant 32 : i32
    %237 = tpu.dynamic_rotate %233 by %c32_i32_108 dim 1 : vector<1x128xf32>, i32 -> vector<1x128xf32>
    %238 = arith.mulf %235, %222 : vector<1x128xf32>
    %239 = arith.mulf %233, %236 : vector<1x128xf32>
    %240 = arith.addf %238, %239 : vector<1x128xf32>
    %241 = math.tanh %240 : vector<1x128xf32>
    %242 = arith.mulf %237, %241 : vector<1x128xf32>
    %c12_109 = arith.constant 12 : index
    %c0_110 = arith.constant 0 : index
    %243 = vector.load %arg6[%c12_109, %c0_110] : memref<16x128xf32, #tpu.memory_space<vmem>>, vector<1x128xf32>
    tpu.vector_store %arg6[%c12_109, %c0_110], %242 {strides = array<i32>} : memref<16x128xf32, #tpu.memory_space<vmem>>, vector<1x128xf32>,
    %c13 = arith.constant 13 : index
    %c0_111 = arith.constant 0 : index
    %244 = vector.load %arg5[%c13, %c0_111] : memref<16x128xf32, #tpu.memory_space<vmem>>, vector<1x128xf32>
    %cst_112 = arith.constant dense<0.000000e+00> : vector<1x128xf32>
    %245 = tpu.matmul %242, %7, %cst_112 {dimension_numbers = #tpu.dot_dimension_numbers<[1], [0], [0], [1], [0, 0, 1, 1], [], []>} : vector<1x128xf32>, vector<128x128xf32>, vector<1x128xf32> -> vector<1x128xf32>
    %246 = arith.addf %244, %245 : vector<1x128xf32>
    %247 = arith.negf %246 : vector<1x128xf32>
    %248 = math.exp %247 : vector<1x128xf32>
    %cst_113 = arith.constant 1.000000e+00 : f32
    %249 = vector.broadcast %cst_113 : f32 to vector<1x128xf32>
    %250 = arith.addf %249, %248 : vector<1x128xf32>
    %251 = arith.divf %249, %250 : vector<1x128xf32>
    %252 = math.tanh %246 : vector<1x128xf32>
    %c96_i32_114 = arith.constant 96 : i32
    %253 = tpu.dynamic_rotate %251 by %c96_i32_114 dim 1 : vector<1x128xf32>, i32 -> vector<1x128xf32>
    %c64_i32_115 = arith.constant 64 : i32
    %254 = tpu.dynamic_rotate %252 by %c64_i32_115 dim 1 : vector<1x128xf32>, i32 -> vector<1x128xf32>
    %c32_i32_116 = arith.constant 32 : i32
    %255 = tpu.dynamic_rotate %251 by %c32_i32_116 dim 1 : vector<1x128xf32>, i32 -> vector<1x128xf32>
    %256 = arith.mulf %253, %240 : vector<1x128xf32>
    %257 = arith.mulf %251, %254 : vector<1x128xf32>
    %258 = arith.addf %256, %257 : vector<1x128xf32>
    %259 = math.tanh %258 : vector<1x128xf32>
    %260 = arith.mulf %255, %259 : vector<1x128xf32>
    %c13_117 = arith.constant 13 : index
    %c0_118 = arith.constant 0 : index
    %261 = vector.load %arg6[%c13_117, %c0_118] : memref<16x128xf32, #tpu.memory_space<vmem>>, vector<1x128xf32>
    tpu.vector_store %arg6[%c13_117, %c0_118], %260 {strides = array<i32>} : memref<16x128xf32, #tpu.memory_space<vmem>>, vector<1x128xf32>,
    %c14 = arith.constant 14 : index
    %c0_119 = arith.constant 0 : index
    %262 = vector.load %arg5[%c14, %c0_119] : memref<16x128xf32, #tpu.memory_space<vmem>>, vector<1x128xf32>
    %cst_120 = arith.constant dense<0.000000e+00> : vector<1x128xf32>
    %263 = tpu.matmul %260, %7, %cst_120 {dimension_numbers = #tpu.dot_dimension_numbers<[1], [0], [0], [1], [0, 0, 1, 1], [], []>} : vector<1x128xf32>, vector<128x128xf32>, vector<1x128xf32> -> vector<1x128xf32>
    %264 = arith.addf %262, %263 : vector<1x128xf32>
    %265 = arith.negf %264 : vector<1x128xf32>
    %266 = math.exp %265 : vector<1x128xf32>
    %cst_121 = arith.constant 1.000000e+00 : f32
    %267 = vector.broadcast %cst_121 : f32 to vector<1x128xf32>
    %268 = arith.addf %267, %266 : vector<1x128xf32>
    %269 = arith.divf %267, %268 : vector<1x128xf32>
    %270 = math.tanh %264 : vector<1x128xf32>
    %c96_i32_122 = arith.constant 96 : i32
    %271 = tpu.dynamic_rotate %269 by %c96_i32_122 dim 1 : vector<1x128xf32>, i32 -> vector<1x128xf32>
    %c64_i32_123 = arith.constant 64 : i32
    %272 = tpu.dynamic_rotate %270 by %c64_i32_123 dim 1 : vector<1x128xf32>, i32 -> vector<1x128xf32>
    %c32_i32_124 = arith.constant 32 : i32
    %273 = tpu.dynamic_rotate %269 by %c32_i32_124 dim 1 : vector<1x128xf32>, i32 -> vector<1x128xf32>
    %274 = arith.mulf %271, %258 : vector<1x128xf32>
    %275 = arith.mulf %269, %272 : vector<1x128xf32>
    %276 = arith.addf %274, %275 : vector<1x128xf32>
    %277 = math.tanh %276 : vector<1x128xf32>
    %278 = arith.mulf %273, %277 : vector<1x128xf32>
    %c14_125 = arith.constant 14 : index
    %c0_126 = arith.constant 0 : index
    %279 = vector.load %arg6[%c14_125, %c0_126] : memref<16x128xf32, #tpu.memory_space<vmem>>, vector<1x128xf32>
    tpu.vector_store %arg6[%c14_125, %c0_126], %278 {strides = array<i32>} : memref<16x128xf32, #tpu.memory_space<vmem>>, vector<1x128xf32>,
    %c15 = arith.constant 15 : index
    %c0_127 = arith.constant 0 : index
    %280 = vector.load %arg5[%c15, %c0_127] : memref<16x128xf32, #tpu.memory_space<vmem>>, vector<1x128xf32>
    %cst_128 = arith.constant dense<0.000000e+00> : vector<1x128xf32>
    %281 = tpu.matmul %278, %7, %cst_128 {dimension_numbers = #tpu.dot_dimension_numbers<[1], [0], [0], [1], [0, 0, 1, 1], [], []>} : vector<1x128xf32>, vector<128x128xf32>, vector<1x128xf32> -> vector<1x128xf32>
    %282 = arith.addf %280, %281 : vector<1x128xf32>
    %283 = arith.negf %282 : vector<1x128xf32>
    %284 = math.exp %283 : vector<1x128xf32>
    %cst_129 = arith.constant 1.000000e+00 : f32
    %285 = vector.broadcast %cst_129 : f32 to vector<1x128xf32>
    %286 = arith.addf %285, %284 : vector<1x128xf32>
    %287 = arith.divf %285, %286 : vector<1x128xf32>
    %288 = math.tanh %282 : vector<1x128xf32>
    %c96_i32_130 = arith.constant 96 : i32
    %289 = tpu.dynamic_rotate %287 by %c96_i32_130 dim 1 : vector<1x128xf32>, i32 -> vector<1x128xf32>
    %c64_i32_131 = arith.constant 64 : i32
    %290 = tpu.dynamic_rotate %288 by %c64_i32_131 dim 1 : vector<1x128xf32>, i32 -> vector<1x128xf32>
    %c32_i32_132 = arith.constant 32 : i32
    %291 = tpu.dynamic_rotate %287 by %c32_i32_132 dim 1 : vector<1x128xf32>, i32 -> vector<1x128xf32>
    %292 = arith.mulf %289, %276 : vector<1x128xf32>
    %293 = arith.mulf %287, %290 : vector<1x128xf32>
    %294 = arith.addf %292, %293 : vector<1x128xf32>
    %295 = math.tanh %294 : vector<1x128xf32>
    %296 = arith.mulf %291, %295 : vector<1x128xf32>
    %c15_133 = arith.constant 15 : index
    %c0_134 = arith.constant 0 : index
    %297 = vector.load %arg6[%c15_133, %c0_134] : memref<16x128xf32, #tpu.memory_space<vmem>>, vector<1x128xf32>
    tpu.vector_store %arg6[%c15_133, %c0_134], %296 {strides = array<i32>} : memref<16x128xf32, #tpu.memory_space<vmem>>, vector<1x128xf32>,
    %c257 = arith.constant 257 : index
    %c0_135 = arith.constant 0 : index
    %298 = vector.load %arg3[%c257, %c0_135] : memref<260x128xf32, #tpu.memory_space<vmem>>, vector<1x128xf32>
    %c258 = arith.constant 258 : index
    %c0_136 = arith.constant 0 : index
    %299 = vector.load %arg3[%c258, %c0_136] : memref<260x128xf32, #tpu.memory_space<vmem>>, vector<1x128xf32>
    %c259 = arith.constant 259 : index
    %c0_137 = arith.constant 0 : index
    %300 = vector.load %arg3[%c259, %c0_137] : memref<260x128xf32, #tpu.memory_space<vmem>>, vector<1x1xf32>
    %c0_138 = arith.constant 0 : index
    %c0_139 = arith.constant 0 : index
    %301 = vector.load %arg6[%c0_138, %c0_139] : memref<16x128xf32, #tpu.memory_space<vmem>>, vector<16x128xf32>
    %cst_140 = arith.constant dense<0.000000e+00> : vector<1x16xf32>
    %302 = tpu.matmul %298, %301, %cst_140 {dimension_numbers = #tpu.dot_dimension_numbers<[1], [1], [0], [0], [0, 0, 1, 0], [], []>} : vector<1x128xf32>, vector<16x128xf32>, vector<1x16xf32> -> vector<1x16xf32>
    %c0_141 = arith.constant 0 : index
    %c0_142 = arith.constant 0 : index
    %303 = vector.load %arg2[%c0_141, %c0_142] : memref<16x128xf32, #tpu.memory_space<vmem>>, vector<16x128xf32>
    %cst_143 = arith.constant dense<0.000000e+00> : vector<1x16xf32>
    %304 = tpu.matmul %299, %303, %cst_143 {dimension_numbers = #tpu.dot_dimension_numbers<[1], [1], [0], [0], [0, 0, 1, 0], [], []>} : vector<1x128xf32>, vector<16x128xf32>, vector<1x16xf32> -> vector<1x16xf32>
    %305 = arith.addf %302, %304 : vector<1x16xf32>
    %306 = vector.broadcast %300 : vector<1x1xf32> to vector<1x16xf32>
    %307 = arith.addf %305, %306 : vector<1x16xf32>
    %308 = arith.negf %307 : vector<1x16xf32>
    %309 = math.exp %308 : vector<1x16xf32>
    %cst_144 = arith.constant 1.000000e+00 : f32
    %310 = vector.broadcast %cst_144 : f32 to vector<1x16xf32>
    %311 = arith.addf %310, %309 : vector<1x16xf32>
    %312 = arith.divf %310, %311 : vector<1x16xf32>
    %c0_145 = arith.constant 0 : index
    %c0_146 = arith.constant 0 : index
    %313 = vector.load %arg4[%c0_145, %c0_146] : memref<1x16xf32, #tpu.memory_space<vmem>>, vector<1x16xf32>
    tpu.vector_store %arg4[%c0_145, %c0_146], %312 {strides = array<i32>} : memref<1x16xf32, #tpu.memory_space<vmem>>, vector<1x16xf32>,
    return
  }
  func.func @transform_0(%arg0: i32) -> (i32, i32) {
    %c0_i32 = arith.constant 0 : i32
    %c5_i32 = arith.constant 5 : i32
    %c0_i32_0 = arith.constant 0 : i32
    return %c0_i32, %c5_i32 : i32, i32
  }
  func.func @transform_1(%arg0: i32) -> (i32, i32) {
    %c0_i32 = arith.constant 0 : i32
    %c0_i32_0 = arith.constant 0 : i32
    %c0_i32_1 = arith.constant 0 : i32
    return %c0_i32, %c0_i32_0 : i32, i32
  }
  func.func @transform_2(%arg0: i32) -> (i32, i32) {
    %c0_i32 = arith.constant 0 : i32
    %c0_i32_0 = arith.constant 0 : i32
    %c0_i32_1 = arith.constant 0 : i32
    return %c0_i32, %c0_i32_0 : i32, i32
  }
  func.func @transform_3(%arg0: i32) -> (i32, i32) {
    %c0_i32 = arith.constant 0 : i32
    %c0_i32_0 = arith.constant 0 : i32
    %c0_i32_1 = arith.constant 0 : i32
    return %c0_i32, %c0_i32_0 : i32, i32
  }
}

</mosaic_0001>

<llo_original>
// kernel: tpu_custom_call.1
$region0: #{tpu_custom_call.1}
  #allocation0 [shape = 'u32[]', space=smem, size = 0x4, offset = 0x4, fixed_abs, tag = 'smem constant byte address 0x4 - core index']
  #allocation1 [shape = 'u32[144,128]{1,0:T(1,128)}', space=vmem, size = 0x12000, scoped, tag = 'internal scratch']
  #allocation2 [shape = 'f32[16,128]{1,0:T(8,128)}', space=vmem, size = 0x2000, scoped, tag = 'scratch operand']
  #allocation3 [shape = 'f32[16,128]{1,0:T(8,128)}', space=vmem, size = 0x2000, scoped, tag = 'scratch operand']
  %s0 = inlined_call_operand.hbm [shape: f32[16,768], index: 0, kind: input, shape index: {}]
  %s1 = inlined_call_operand.hbm [shape: f32[16,128], index: 1, kind: input, shape index: {}]
  %s2 = inlined_call_operand.hbm [shape: f32[260,128], index: 2, kind: input, shape index: {}]
  %s3 = inlined_call_operand.hbm [shape: f32[1,16], index: 3, kind: output, shape index: {}]
  %s4 = sld [smem:[#allocation0]]
  $region34: #{tpu_custom_call.1} parent=0
    _
  %s6 = ssub.s32 1, %s4
  %s7 = scalar_select 0, %s6, %s4
  $region1: #{tpu_custom_call.1} parent=0
    #allocation4 [shape = 'u8[8192]{0}', space=vmem, size = 0x2000, scoped, tag = 'input window, operand 0, single buffered']
    #allocation5 [shape = 's32[1]{0}', space=sflag, size = 0x4, scoped, tag = 'scoped memory for tpu_custom_call.1']
    #allocation6 [shape = 's32[1]{0}', space=sflag, size = 0x4, scoped, tag = 'scoped memory for tpu_custom_call.1']
    #allocation7 [shape = 'u8[8192]{0}', space=vmem, size = 0x2000, scoped, tag = 'input window, operand 1, single buffered']
    #allocation8 [shape = 's32[1]{0}', space=sflag, size = 0x4, scoped, tag = 'scoped memory for tpu_custom_call.1']
    #allocation9 [shape = 'u8[135168]{0}', space=vmem, size = 0x21000, scoped, tag = 'input window, operand 2, single buffered']
    #allocation10 [shape = 'u8[512]{0}', space=vmem, size = 0x400, scoped, tag = 'output window, operand 0, single buffered']
    %8 = vsyncpa [#allocation5], 0
    %9 = vsyncpa [#allocation8], 0
    %10 = vsyncpa [#allocation6], 0
    // Predicated region
    $region2: #{tpu_custom_call.1} parent=1 // pred_check
      _
    $region3: #{tpu_custom_call.1} parent=1 // pred_check_branch
      %12 = sbr.rel (0) target = $region5
    $region4: #{tpu_custom_call.1} parent=1 // pred_region
      %s14 = ssub.s32 256, 256
      %15 = vsyncadd [#allocation5], %s14
      %s16 = scalar_lea.hbm %s0, 640
      %s17 = sshll.u32 [#allocation4], 4
      %s18 = int_to_ptr.vmem [resolvable:$true] %s17
      %23 = dma.hbm_to_vmem [thread:$0]  %s16, 256, %s18, [#allocation5], 768, 128, 8
    $region5: #{tpu_custom_call.1} parent=1 // pred_fallthru
      _
    // Predicated region
    $region6: #{tpu_custom_call.1} parent=1 // pred_check
      _
    $region7: #{tpu_custom_call.1} parent=1 // pred_check_branch
      %25 = sbr.rel (0) target = $region9
    $region8: #{tpu_custom_call.1} parent=1 // pred_region
      %s27 = ssub.s32 256, 256
      %28 = vsyncadd [#allocation8], %s27
      %s29 = sshll.u32 [#allocation7], 4
      %s30 = int_to_ptr.vmem [resolvable:$true] %s29
      %35 = dma.hbm_to_vmem [thread:$0]  %s1, 256, %s30, [#allocation8], 128, 128, 8
    $region9: #{tpu_custom_call.1} parent=1 // pred_fallthru
      _
    // Predicated region
    $region10: #{tpu_custom_call.1} parent=1 // pred_check
      _
    $region11: #{tpu_custom_call.1} parent=1 // pred_check_branch
      %37 = sbr.rel (0) target = $region13
    $region12: #{tpu_custom_call.1} parent=1 // pred_region
      %s39 = ssub.s32 4224, 4224
      %40 = vsyncadd [#allocation8], %s39
      %s41 = sshll.u32 [#allocation9], 4
      %s42 = int_to_ptr.vmem [resolvable:$true] %s41
      %47 = dma.hbm_to_vmem [thread:$0]  %s2, 4224, %s42, [#allocation8], 128, 128, 8
    $region13: #{tpu_custom_call.1} parent=1 // pred_fallthru
      _
    // Predicated region
    $region14: #{tpu_custom_call.1} parent=1 // pred_check
      _
    $region15: #{tpu_custom_call.1} parent=1 // pred_check_branch
      %49 = sbr.rel (0) target = $region17
    $region16: #{tpu_custom_call.1} parent=1 // pred_region
      %50 = dma.done [#allocation5], 256
    $region17: #{tpu_custom_call.1} parent=1 // pred_fallthru
      _
    // Predicated region
    $region18: #{tpu_custom_call.1} parent=1 // pred_check
      _
    $region19: #{tpu_custom_call.1} parent=1 // pred_check_branch
      %52 = sbr.rel (0) target = $region21
    $region20: #{tpu_custom_call.1} parent=1 // pred_region
      %53 = dma.done [#allocation8], 256
    $region21: #{tpu_custom_call.1} parent=1 // pred_fallthru
      _
    // Predicated region
    $region22: #{tpu_custom_call.1} parent=1 // pred_check
      _
    $region23: #{tpu_custom_call.1} parent=1 // pred_check_branch
      %55 = sbr.rel (0) target = $region25
    $region24: #{tpu_custom_call.1} parent=1 // pred_region
      %56 = dma.done [#allocation8], 4224
    $region25: #{tpu_custom_call.1} parent=1 // pred_fallthru
      _
    %v57 = vld [vmem:[#allocation9] sm:$0xff]
    %v58 = vld [vmem:[#allocation9 + $0x8] sm:$0xff]
    %v59 = vld [vmem:[#allocation9 + $0x10] sm:$0xff]
    %v60 = vld [vmem:[#allocation9 + $0x18] sm:$0xff]
    %v61 = vld [vmem:[#allocation9 + $0x20] sm:$0xff]
    %v62 = vld [vmem:[#allocation9 + $0x28] sm:$0xff]
    %v63 = vld [vmem:[#allocation9 + $0x30] sm:$0xff]
    %v64 = vld [vmem:[#allocation9 + $0x38] sm:$0xff]
    %v65 = vld [vmem:[#allocation9 + $0x40] sm:$0xff]
    %v66 = vld [vmem:[#allocation9 + $0x48] sm:$0xff]
    %v67 = vld [vmem:[#allocation9 + $0x50] sm:$0xff]
    %v68 = vld [vmem:[#allocation9 + $0x58] sm:$0xff]
    %v69 = vld [vmem:[#allocation9 + $0x60] sm:$0xff]
    %v70 = vld [vmem:[#allocation9 + $0x68] sm:$0xff]
    %v71 = vld [vmem:[#allocation9 + $0x70] sm:$0xff]
    %v72 = vld [vmem:[#allocation9 + $0x78] sm:$0xff]
    %v73 = vld [vmem:[#allocation9 + $0x100] sm:$0x1]
    %v74 = vld [vmem:[#allocation4] sm:$0xff]
    %v75 = vld [vmem:[#allocation4 + $0x8] sm:$0xff]
    %v76 = vlaneseq
    %v77 = vshrl.u32 %v76, 7
    %v78 = vsub.s32 0, %v77
    %v79 = vrot.slane %v73, %v78
    %80 = vmatprep.subr.mxu0 0.0
    %81 = vmatpush1.msra.mxu0 %v57
    %82 = vmatprep.subr.mxu0 0.0
    %83 = vmatpush1.msra.mxu0 %v58
    %84 = vmatprep.subr.mxu0 0.0
    %85 = vmatpush1.msra.mxu0 %v59
    %86 = vmatprep.subr.mxu0 0.0
    %87 = vmatpush1.msra.mxu0 %v60
    %88 = vmatprep.subr.mxu0 0.0
    %89 = vmatpush1.msra.mxu0 %v61
    %90 = vmatprep.subr.mxu0 0.0
    %91 = vmatpush1.msra.mxu0 %v62
    %92 = vmatprep.subr.mxu0 0.0
    %93 = vmatpush1.msra.mxu0 %v63
    %94 = vmatprep.subr.mxu0 0.0
    %95 = vmatpush1.msra.mxu0 %v64
    %96 = vmatprep.subr.mxu0 0.0
    %97 = vmatpush1.msra.mxu0 %v65
    %98 = vmatprep.subr.mxu0 0.0
    %99 = vmatpush1.msra.mxu0 %v66
    %100 = vmatprep.subr.mxu0 0.0
    %101 = vmatpush1.msra.mxu0 %v67
    %102 = vmatprep.subr.mxu0 0.0
    %103 = vmatpush1.msra.mxu0 %v68
    %104 = vmatprep.subr.mxu0 0.0
    %105 = vmatpush1.msra.mxu0 %v69
    %106 = vmatprep.subr.mxu0 0.0
    %107 = vmatpush1.msra.mxu0 %v70
    %108 = vmatprep.subr.mxu0 0.0
    %109 = vmatpush1.msra.mxu0 %v71
    %110 = vmatprep.subr.mxu0 0.0
    %111 = vmatpush1.msra.mxu0 %v72
    %112 = vmatprep.subr.mxu0 0.0
    %113 = vmatpush1.msra.mxu0 0.0
    %114 = vmatprep.subr.mxu0 0.0
    %115 = vmatpush1.msra.mxu0 0.0
    %116 = vmatprep.subr.mxu0 0.0
    %117 = vmatpush1.msra.mxu0 0.0
    %118 = vmatprep.subr.mxu0 0.0
    %119 = vmatpush1.msra.mxu0 0.0
    %120 = vmatprep.subr.mxu0 0.0
    %121 = vmatpush1.msra.mxu0 0.0
    %122 = vmatprep.subr.mxu0 0.0
    %123 = vmatpush1.msra.mxu0 0.0
    %124 = vmatprep.subr.mxu0 0.0
    %125 = vmatpush1.msra.mxu0 0.0
    %126 = vmatprep.subr.mxu0 0.0
    %127 = vmatpush1.msra.mxu0 0.0
    %128 = vmatprep.subr.mxu0 0.0
    %129 = vmatpush1.msra.mxu0 0.0
    %130 = vmatprep.subr.mxu0 0.0
    %131 = vmatpush1.msra.mxu0 0.0
    %132 = vmatprep.subr.mxu0 0.0
    %133 = vmatpush1.msra.mxu0 0.0
    %134 = vmatprep.subr.mxu0 0.0
    %135 = vmatpush1.msra.mxu0 0.0
    %136 = vmatprep.subr.mxu0 0.0
    %137 = vmatpush1.msra.mxu0 0.0
    %138 = vmatprep.subr.mxu0 0.0
    %139 = vmatpush1.msra.mxu0 0.0
    %140 = vmatprep.subr.mxu0 0.0
    %141 = vmatpush1.msra.mxu0 0.0
    %142 = vmatprep.subr.mxu0 0.0
    %143 = vmatpush1.msra.mxu0 0.0
    %144 = vmatprep.mubr.f32.mxu0 0.0
    %145 = vmatmul.mubr.f32.gmra.mrb[0].mxu0 %v74
    %v146 = vpop.f32.mrb[0].mxu0
    %v147 = vadd.f32 %v79, %v146
    %v148 = vpop.f32.mrb[0].mxu0
    %149 = vmatprep.mubr.f32.mxu0 0.0
    %150 = vmatmul.mubr.f32.gmra.mrb[0].mxu0 %v75
    %v151 = vpop.f32.mrb[0].mxu0
    %v152 = vadd.f32 %v79, %v151
    %v153 = vpop.f32.mrb[0].mxu0
    %154 = vdwg.mxu0
    %155 = vst [vmem:[#allocation2] sm:$0xff] %v147
    %156 = vst [vmem:[#allocation2 + $0x8] sm:$0xff] %v152
    %v157 = vld [vmem:[#allocation9 + $0x80] sm:$0xff]
    %v158 = vld [vmem:[#allocation9 + $0x88] sm:$0xff]
    %v159 = vld [vmem:[#allocation9 + $0x90] sm:$0xff]
    %v160 = vld [vmem:[#allocation9 + $0x98] sm:$0xff]
    %v161 = vld [vmem:[#allocation9 + $0xa0] sm:$0xff]
    %v162 = vld [vmem:[#allocation9 + $0xa8] sm:$0xff]
    %v163 = vld [vmem:[#allocation9 + $0xb0] sm:$0xff]
    %v164 = vld [vmem:[#allocation9 + $0xb8] sm:$0xff]
    %v165 = vld [vmem:[#allocation9 + $0xc0] sm:$0xff]
    %v166 = vld [vmem:[#allocation9 + $0xc8] sm:$0xff]
    %v167 = vld [vmem:[#allocation9 + $0xd0] sm:$0xff]
    %v168 = vld [vmem:[#allocation9 + $0xd8] sm:$0xff]
    %v169 = vld [vmem:[#allocation9 + $0xe0] sm:$0xff]
    %v170 = vld [vmem:[#allocation9 + $0xe8] sm:$0xff]
    %v171 = vld [vmem:[#allocation9 + $0xf0] sm:$0xff]
    %v172 = vld [vmem:[#allocation9 + $0xf8] sm:$0xff]
    %v173 = vld [vmem:[#allocation2] sm:$0x1]
    %174 = vmatprep.subr.mxu0 0.0
    %175 = vmatpush1.msra.mxu0 %v157
    %176 = vmatprep.subr.mxu0 0.0
    %177 = vmatpush1.msra.mxu0 %v158
    %178 = vmatprep.subr.mxu0 0.0
    %179 = vmatpush1.msra.mxu0 %v159
    %180 = vmatprep.subr.mxu0 0.0
    %181 = vmatpush1.msra.mxu0 %v160
    %182 = vmatprep.subr.mxu0 0.0
    %183 = vmatpush1.msra.mxu0 %v161
    %184 = vmatprep.subr.mxu0 0.0
    %185 = vmatpush1.msra.mxu0 %v162
    %186 = vmatprep.subr.mxu0 0.0
    %187 = vmatpush1.msra.mxu0 %v163
    %188 = vmatprep.subr.mxu0 0.0
    %189 = vmatpush1.msra.mxu0 %v164
    %190 = vmatprep.subr.mxu0 0.0
    %191 = vmatpush1.msra.mxu0 %v165
    %192 = vmatprep.subr.mxu0 0.0
    %193 = vmatpush1.msra.mxu0 %v166
    %194 = vmatprep.subr.mxu0 0.0
    %195 = vmatpush1.msra.mxu0 %v167
    %196 = vmatprep.subr.mxu0 0.0
    %197 = vmatpush1.msra.mxu0 %v168
    %198 = vmatprep.subr.mxu0 0.0
    %199 = vmatpush1.msra.mxu0 %v169
    %200 = vmatprep.subr.mxu0 0.0
    %201 = vmatpush1.msra.mxu0 %v170
    %202 = vmatprep.subr.mxu0 0.0
    %203 = vmatpush1.msra.mxu0 %v171
    %204 = vmatprep.subr.mxu0 0.0
    %205 = vmatpush1.msra.mxu0 %v172
    %206 = vmatprep.subr.mxu0 0.0
    %207 = vmatpush1.msra.mxu0 0.0
    %208 = vmatprep.subr.mxu0 0.0
    %209 = vmatpush1.msra.mxu0 0.0
    %210 = vmatprep.subr.mxu0 0.0
    %211 = vmatpush1.msra.mxu0 0.0
    %212 = vmatprep.subr.mxu0 0.0
    %213 = vmatpush1.msra.mxu0 0.0
    %214 = vmatprep.subr.mxu0 0.0
    %215 = vmatpush1.msra.mxu0 0.0
    %216 = vmatprep.subr.mxu0 0.0
    %217 = vmatpush1.msra.mxu0 0.0
    %218 = vmatprep.subr.mxu0 0.0
    %219 = vmatpush1.msra.mxu0 0.0
    %220 = vmatprep.subr.mxu0 0.0
    %221 = vmatpush1.msra.mxu0 0.0
    %222 = vmatprep.subr.mxu0 0.0
    %223 = vmatpush1.msra.mxu0 0.0
    %224 = vmatprep.subr.mxu0 0.0
    %225 = vmatpush1.msra.mxu0 0.0
    %226 = vmatprep.subr.mxu0 0.0
    %227 = vmatpush1.msra.mxu0 0.0
    %228 = vmatprep.subr.mxu0 0.0
    %229 = vmatpush1.msra.mxu0 0.0
    %230 = vmatprep.subr.mxu0 0.0
    %231 = vmatpush1.msra.mxu0 0.0
    %232 = vmatprep.subr.mxu0 0.0
    %233 = vmatpush1.msra.mxu0 0.0
    %234 = vmatprep.subr.mxu0 0.0
    %235 = vmatpush1.msra.mxu0 0.0
    %236 = vmatprep.subr.mxu0 0.0
    %237 = vmatpush1.msra.mxu0 0.0
    %238 = vmatprep.mubr.f32.mxu0 0.0
    %239 = vmatmul.mubr.f32.gmra.mrb[0].mxu0 0.0
    %v240 = vpop.f32.mrb[0].mxu0
    %v241 = vadd.f32 0.0, %v240
    %v242 = vpop.f32.mrb[0].mxu0
    %243 = vdwg.mxu0
    %v244 = vadd.f32 %v173, %v241
    %v245 = vxor.u32 %v244, 2147483648
    %v246 = vmul.f32 %v245, 1.442695
    %v247 = vpow.pop %v246
    %v248 = vadd.f32 %v247, 1.0
    %v249 = vrcp.pop %v248
    %v250 = vmul.f32 1.0, %v249
    %v251 = vtanh.pop %v244
    %252 = vrot.lane.b32.xlu0 %v250, 96
    %v253 = vpop.permute.xlu0 %252
    %254 = vrot.lane.b32.xlu0 %v251, 64
    %v255 = vpop.permute.xlu0 %254
    %256 = vrot.lane.b32.xlu0 %v250, 32
    %v257 = vpop.permute.xlu0 %256
    %v258 = vmul.f32 %v253, 0.0
    %v259 = vmul.f32 %v250, %v255
    %v260 = vadd.f32 %v258, %v259
    %v261 = vtanh.pop %v260
    %v262 = vmul.f32 %v257, %v261
    %263 = vst [vmem:[#allocation3] sm:$0x1] %v262
    %v264 = vld [vmem:[#allocation2 + $0x1] sm:$0x1]
    %265 = vmatprep.subr.mxu0 0.0
    %266 = vmatpush1.msra.mxu0 %v157
    %267 = vmatprep.subr.mxu0 0.0
    %268 = vmatpush1.msra.mxu0 %v158
    %269 = vmatprep.subr.mxu0 0.0
    %270 = vmatpush1.msra.mxu0 %v159
    %271 = vmatprep.subr.mxu0 0.0
    %272 = vmatpush1.msra.mxu0 %v160
    %273 = vmatprep.subr.mxu0 0.0
    %274 = vmatpush1.msra.mxu0 %v161
    %275 = vmatprep.subr.mxu0 0.0
    %276 = vmatpush1.msra.mxu0 %v162
    %277 = vmatprep.subr.mxu0 0.0
    %278 = vmatpush1.msra.mxu0 %v163
    %279 = vmatprep.subr.mxu0 0.0
    %280 = vmatpush1.msra.mxu0 %v164
    %281 = vmatprep.subr.mxu0 0.0
    %282 = vmatpush1.msra.mxu0 %v165
    %283 = vmatprep.subr.mxu0 0.0
    %284 = vmatpush1.msra.mxu0 %v166
    %285 = vmatprep.subr.mxu0 0.0
    %286 = vmatpush1.msra.mxu0 %v167
    %287 = vmatprep.subr.mxu0 0.0
    %288 = vmatpush1.msra.mxu0 %v168
    %289 = vmatprep.subr.mxu0 0.0
    %290 = vmatpush1.msra.mxu0 %v169
    %291 = vmatprep.subr.mxu0 0.0
    %292 = vmatpush1.msra.mxu0 %v170
    %293 = vmatprep.subr.mxu0 0.0
    %294 = vmatpush1.msra.mxu0 %v171
    %295 = vmatprep.subr.mxu0 0.0
    %296 = vmatpush1.msra.mxu0 %v172
    %297 = vmatprep.subr.mxu0 0.0
    %298 = vmatpush1.msra.mxu0 0.0
    %299 = vmatprep.subr.mxu0 0.0
    %300 = vmatpush1.msra.mxu0 0.0
    %301 = vmatprep.subr.mxu0 0.0
    %302 = vmatpush1.msra.mxu0 0.0
    %303 = vmatprep.subr.mxu0 0.0
    %304 = vmatpush1.msra.mxu0 0.0
    %305 = vmatprep.subr.mxu0 0.0
    %306 = vmatpush1.msra.mxu0 0.0
    %307 = vmatprep.subr.mxu0 0.0
    %308 = vmatpush1.msra.mxu0 0.0
    %309 = vmatprep.subr.mxu0 0.0
    %310 = vmatpush1.msra.mxu0 0.0
    %311 = vmatprep.subr.mxu0 0.0
    %312 = vmatpush1.msra.mxu0 0.0
    %313 = vmatprep.subr.mxu0 0.0
    %314 = vmatpush1.msra.mxu0 0.0
    %315 = vmatprep.subr.mxu0 0.0
    %316 = vmatpush1.msra.mxu0 0.0
    %317 = vmatprep.subr.mxu0 0.0
    %318 = vmatpush1.msra.mxu0 0.0
    %319 = vmatprep.subr.mxu0 0.0
    %320 = vmatpush1.msra.mxu0 0.0
    %321 = vmatprep.subr.mxu0 0.0
    %322 = vmatpush1.msra.mxu0 0.0
    %323 = vmatprep.subr.mxu0 0.0
    %324 = vmatpush1.msra.mxu0 0.0
    %325 = vmatprep.subr.mxu0 0.0
    %326 = vmatpush1.msra.mxu0 0.0
    %327 = vmatprep.subr.mxu0 0.0
    %328 = vmatpush1.msra.mxu0 0.0
    %329 = vmatprep.mubr.f32.mxu0 0.0
    %330 = vmatmul.mubr.f32.gmra.mrb[0].mxu0 %v262
    %v331 = vpop.f32.mrb[0].mxu0
    %v332 = vadd.f32 0.0, %v331
    %v333 = vpop.f32.mrb[0].mxu0
    %334 = vdwg.mxu0
    %v335 = vadd.f32 %v264, %v332
    %v336 = vxor.u32 %v335, 2147483648
    %v337 = vmul.f32 %v336, 1.442695
    %v338 = vpow.pop %v337
    %v339 = vadd.f32 %v338, 1.0
    %v340 = vrcp.pop %v339
    %v341 = vmul.f32 1.0, %v340
    %v342 = vtanh.pop %v335
    %343 = vrot.lane.b32.xlu0 %v341, 96
    %v344 = vpop.permute.xlu0 %343
    %345 = vrot.lane.b32.xlu0 %v342, 64
    %v346 = vpop.permute.xlu0 %345
    %347 = vrot.lane.b32.xlu0 %v341, 32
    %v348 = vpop.permute.xlu0 %347
    %v349 = vmul.f32 %v344, %v260
    %v350 = vmul.f32 %v341, %v346
    %v351 = vadd.f32 %v349, %v350
    %v352 = vtanh.pop %v351
    %v353 = vmul.f32 %v348, %v352
    %354 = vst [vmem:[#allocation3 + $0x1] sm:$0x1] %v353
    %v355 = vld [vmem:[#allocation2 + $0x2] sm:$0x1]
    %356 = vmatprep.subr.mxu0 0.0
    %357 = vmatpush1.msra.mxu0 %v157
    %358 = vmatprep.subr.mxu0 0.0
    %359 = vmatpush1.msra.mxu0 %v158
    %360 = vmatprep.subr.mxu0 0.0
    %361 = vmatpush1.msra.mxu0 %v159
    %362 = vmatprep.subr.mxu0 0.0
    %363 = vmatpush1.msra.mxu0 %v160
    %364 = vmatprep.subr.mxu0 0.0
    %365 = vmatpush1.msra.mxu0 %v161
    %366 = vmatprep.subr.mxu0 0.0
    %367 = vmatpush1.msra.mxu0 %v162
    %368 = vmatprep.subr.mxu0 0.0
    %369 = vmatpush1.msra.mxu0 %v163
    %370 = vmatprep.subr.mxu0 0.0
    %371 = vmatpush1.msra.mxu0 %v164
    %372 = vmatprep.subr.mxu0 0.0
    %373 = vmatpush1.msra.mxu0 %v165
    %374 = vmatprep.subr.mxu0 0.0
    %375 = vmatpush1.msra.mxu0 %v166
    %376 = vmatprep.subr.mxu0 0.0
    %377 = vmatpush1.msra.mxu0 %v167
    %378 = vmatprep.subr.mxu0 0.0
    %379 = vmatpush1.msra.mxu0 %v168
    %380 = vmatprep.subr.mxu0 0.0
    %381 = vmatpush1.msra.mxu0 %v169
    %382 = vmatprep.subr.mxu0 0.0
    %383 = vmatpush1.msra.mxu0 %v170
    %384 = vmatprep.subr.mxu0 0.0
    %385 = vmatpush1.msra.mxu0 %v171
    %386 = vmatprep.subr.mxu0 0.0
    %387 = vmatpush1.msra.mxu0 %v172
    %388 = vmatprep.subr.mxu0 0.0
    %389 = vmatpush1.msra.mxu0 0.0
    %390 = vmatprep.subr.mxu0 0.0
    %391 = vmatpush1.msra.mxu0 0.0
    %392 = vmatprep.subr.mxu0 0.0
    %393 = vmatpush1.msra.mxu0 0.0
    %394 = vmatprep.subr.mxu0 0.0
    %395 = vmatpush1.msra.mxu0 0.0
    %396 = vmatprep.subr.mxu0 0.0
    %397 = vmatpush1.msra.mxu0 0.0
    %398 = vmatprep.subr.mxu0 0.0
    %399 = vmatpush1.msra.mxu0 0.0
    %400 = vmatprep.subr.mxu0 0.0
    %401 = vmatpush1.msra.mxu0 0.0
    %402 = vmatprep.subr.mxu0 0.0
    %403 = vmatpush1.msra.mxu0 0.0
    %404 = vmatprep.subr.mxu0 0.0
    %405 = vmatpush1.msra.mxu0 0.0
    %406 = vmatprep.subr.mxu0 0.0
    %407 = vmatpush1.msra.mxu0 0.0
    %408 = vmatprep.subr.mxu0 0.0
    %409 = vmatpush1.msra.mxu0 0.0
    %410 = vmatprep.subr.mxu0 0.0
    %411 = vmatpush1.msra.mxu0 0.0
    %412 = vmatprep.subr.mxu0 0.0
    %413 = vmatpush1.msra.mxu0 0.0
    %414 = vmatprep.subr.mxu0 0.0
    %415 = vmatpush1.msra.mxu0 0.0
    %416 = vmatprep.subr.mxu0 0.0
    %417 = vmatpush1.msra.mxu0 0.0
    %418 = vmatprep.subr.mxu0 0.0
    %419 = vmatpush1.msra.mxu0 0.0
    %420 = vmatprep.mubr.f32.mxu0 0.0
    %421 = vmatmul.mubr.f32.gmra.mrb[0].mxu0 %v353
    %v422 = vpop.f32.mrb[0].mxu0
    %v423 = vadd.f32 0.0, %v422
    %v424 = vpop.f32.mrb[0].mxu0
    %425 = vdwg.mxu0
    %v426 = vadd.f32 %v355, %v423
    %v427 = vxor.u32 %v426, 2147483648
    %v428 = vmul.f32 %v427, 1.442695
    %v429 = vpow.pop %v428
    %v430 = vadd.f32 %v429, 1.0
    %v431 = vrcp.pop %v430
    %v432 = vmul.f32 1.0, %v431
    %v433 = vtanh.pop %v426
    %434 = vrot.lane.b32.xlu0 %v432, 96
    %v435 = vpop.permute.xlu0 %434
    %436 = vrot.lane.b32.xlu0 %v433, 64
    %v437 = vpop.permute.xlu0 %436
    %438 = vrot.lane.b32.xlu0 %v432, 32
    %v439 = vpop.permute.xlu0 %438
    %v440 = vmul.f32 %v435, %v351
    %v441 = vmul.f32 %v432, %v437
    %v442 = vadd.f32 %v440, %v441
    %v443 = vtanh.pop %v442
    %v444 = vmul.f32 %v439, %v443
    %445 = vst [vmem:[#allocation3 + $0x2] sm:$0x1] %v444
    %v446 = vld [vmem:[#allocation2 + $0x3] sm:$0x1]
    %447 = vmatprep.subr.mxu0 0.0
    %448 = vmatpush1.msra.mxu0 %v157
    %449 = vmatprep.subr.mxu0 0.0
    %450 = vmatpush1.msra.mxu0 %v158
    %451 = vmatprep.subr.mxu0 0.0
    %452 = vmatpush1.msra.mxu0 %v159
    %453 = vmatprep.subr.mxu0 0.0
    %454 = vmatpush1.msra.mxu0 %v160
    %455 = vmatprep.subr.mxu0 0.0
    %456 = vmatpush1.msra.mxu0 %v161
    %457 = vmatprep.subr.mxu0 0.0
    %458 = vmatpush1.msra.mxu0 %v162
    %459 = vmatprep.subr.mxu0 0.0
    %460 = vmatpush1.msra.mxu0 %v163
    %461 = vmatprep.subr.mxu0 0.0
    %462 = vmatpush1.msra.mxu0 %v164
    %463 = vmatprep.subr.mxu0 0.0
    %464 = vmatpush1.msra.mxu0 %v165
    %465 = vmatprep.subr.mxu0 0.0
    %466 = vmatpush1.msra.mxu0 %v166
    %467 = vmatprep.subr.mxu0 0.0
    %468 = vmatpush1.msra.mxu0 %v167
    %469 = vmatprep.subr.mxu0 0.0
    %470 = vmatpush1.msra.mxu0 %v168
    %471 = vmatprep.subr.mxu0 0.0
    %472 = vmatpush1.msra.mxu0 %v169
    %473 = vmatprep.subr.mxu0 0.0
    %474 = vmatpush1.msra.mxu0 %v170
    %475 = vmatprep.subr.mxu0 0.0
    %476 = vmatpush1.msra.mxu0 %v171
    %477 = vmatprep.subr.mxu0 0.0
    %478 = vmatpush1.msra.mxu0 %v172
    %479 = vmatprep.subr.mxu0 0.0
    %480 = vmatpush1.msra.mxu0 0.0
    %481 = vmatprep.subr.mxu0 0.0
    %482 = vmatpush1.msra.mxu0 0.0
    %483 = vmatprep.subr.mxu0 0.0
    %484 = vmatpush1.msra.mxu0 0.0
    %485 = vmatprep.subr.mxu0 0.0
    %486 = vmatpush1.msra.mxu0 0.0
    %487 = vmatprep.subr.mxu0 0.0
    %488 = vmatpush1.msra.mxu0 0.0
    %489 = vmatprep.subr.mxu0 0.0
    %490 = vmatpush1.msra.mxu0 0.0
    %491 = vmatprep.subr.mxu0 0.0
    %492 = vmatpush1.msra.mxu0 0.0
    %493 = vmatprep.subr.mxu0 0.0
    %494 = vmatpush1.msra.mxu0 0.0
    %495 = vmatprep.subr.mxu0 0.0
    %496 = vmatpush1.msra.mxu0 0.0
    %497 = vmatprep.subr.mxu0 0.0
    %498 = vmatpush1.msra.mxu0 0.0
    %499 = vmatprep.subr.mxu0 0.0
    %500 = vmatpush1.msra.mxu0 0.0
    %501 = vmatprep.subr.mxu0 0.0
    %502 = vmatpush1.msra.mxu0 0.0
    %503 = vmatprep.subr.mxu0 0.0
    %504 = vmatpush1.msra.mxu0 0.0
    %505 = vmatprep.subr.mxu0 0.0
    %506 = vmatpush1.msra.mxu0 0.0
    %507 = vmatprep.subr.mxu0 0.0
    %508 = vmatpush1.msra.mxu0 0.0
    %509 = vmatprep.subr.mxu0 0.0
    %510 = vmatpush1.msra.mxu0 0.0
    %511 = vmatprep.mubr.f32.mxu0 0.0
    %512 = vmatmul.mubr.f32.gmra.mrb[0].mxu0 %v444
    %v513 = vpop.f32.mrb[0].mxu0
    %v514 = vadd.f32 0.0, %v513
    %v515 = vpop.f32.mrb[0].mxu0
    %516 = vdwg.mxu0
    %v517 = vadd.f32 %v446, %v514
    %v518 = vxor.u32 %v517, 2147483648
    %v519 = vmul.f32 %v518, 1.442695
    %v520 = vpow.pop %v519
    %v521 = vadd.f32 %v520, 1.0
    %v522 = vrcp.pop %v521
    %v523 = vmul.f32 1.0, %v522
    %v524 = vtanh.pop %v517
    %525 = vrot.lane.b32.xlu0 %v523, 96
    %v526 = vpop.permute.xlu0 %525
    %527 = vrot.lane.b32.xlu0 %v524, 64
    %v528 = vpop.permute.xlu0 %527
    %529 = vrot.lane.b32.xlu0 %v523, 32
    %v530 = vpop.permute.xlu0 %529
    %v531 = vmul.f32 %v526, %v442
    %v532 = vmul.f32 %v523, %v528
    %v533 = vadd.f32 %v531, %v532
    %v534 = vtanh.pop %v533
    %v535 = vmul.f32 %v530, %v534
    %536 = vst [vmem:[#allocation3 + $0x3] sm:$0x1] %v535
    %v537 = vld [vmem:[#allocation2 + $0x4] sm:$0x1]
    %538 = vmatprep.subr.mxu0 0.0
    %539 = vmatpush1.msra.mxu0 %v157
    %540 = vmatprep.subr.mxu0 0.0
    %541 = vmatpush1.msra.mxu0 %v158
    %542 = vmatprep.subr.mxu0 0.0
    %543 = vmatpush1.msra.mxu0 %v159
    %544 = vmatprep.subr.mxu0 0.0
    %545 = vmatpush1.msra.mxu0 %v160
    %546 = vmatprep.subr.mxu0 0.0
    %547 = vmatpush1.msra.mxu0 %v161
    %548 = vmatprep.subr.mxu0 0.0
    %549 = vmatpush1.msra.mxu0 %v162
    %550 = vmatprep.subr.mxu0 0.0
    %551 = vmatpush1.msra.mxu0 %v163
    %552 = vmatprep.subr.mxu0 0.0
    %553 = vmatpush1.msra.mxu0 %v164
    %554 = vmatprep.subr.mxu0 0.0
    %555 = vmatpush1.msra.mxu0 %v165
    %556 = vmatprep.subr.mxu0 0.0
    %557 = vmatpush1.msra.mxu0 %v166
    %558 = vmatprep.subr.mxu0 0.0
    %559 = vmatpush1.msra.mxu0 %v167
    %560 = vmatprep.subr.mxu0 0.0
    %561 = vmatpush1.msra.mxu0 %v168
    %562 = vmatprep.subr.mxu0 0.0
    %563 = vmatpush1.msra.mxu0 %v169
    %564 = vmatprep.subr.mxu0 0.0
    %565 = vmatpush1.msra.mxu0 %v170
    %566 = vmatprep.subr.mxu0 0.0
    %567 = vmatpush1.msra.mxu0 %v171
    %568 = vmatprep.subr.mxu0 0.0
    %569 = vmatpush1.msra.mxu0 %v172
    %570 = vmatprep.subr.mxu0 0.0
    %571 = vmatpush1.msra.mxu0 0.0
    %572 = vmatprep.subr.mxu0 0.0
    %573 = vmatpush1.msra.mxu0 0.0
    %574 = vmatprep.subr.mxu0 0.0
    %575 = vmatpush1.msra.mxu0 0.0
    %576 = vmatprep.subr.mxu0 0.0
    %577 = vmatpush1.msra.mxu0 0.0
    %578 = vmatprep.subr.mxu0 0.0
    %579 = vmatpush1.msra.mxu0 0.0
    %580 = vmatprep.subr.mxu0 0.0
    %581 = vmatpush1.msra.mxu0 0.0
    %582 = vmatprep.subr.mxu0 0.0
    %583 = vmatpush1.msra.mxu0 0.0
    %584 = vmatprep.subr.mxu0 0.0
    %585 = vmatpush1.msra.mxu0 0.0
    %586 = vmatprep.subr.mxu0 0.0
    %587 = vmatpush1.msra.mxu0 0.0
    %588 = vmatprep.subr.mxu0 0.0
    %589 = vmatpush1.msra.mxu0 0.0
    %590 = vmatprep.subr.mxu0 0.0
    %591 = vmatpush1.msra.mxu0 0.0
    %592 = vmatprep.subr.mxu0 0.0
    %593 = vmatpush1.msra.mxu0 0.0
    %594 = vmatprep.subr.mxu0 0.0
    %595 = vmatpush1.msra.mxu0 0.0
    %596 = vmatprep.subr.mxu0 0.0
    %597 = vmatpush1.msra.mxu0 0.0
    %598 = vmatprep.subr.mxu0 0.0
    %599 = vmatpush1.msra.mxu0 0.0
    %600 = vmatprep.subr.mxu0 0.0
    %601 = vmatpush1.msra.mxu0 0.0
    %602 = vmatprep.mubr.f32.mxu0 0.0
    %603 = vmatmul.mubr.f32.gmra.mrb[0].mxu0 %v535
    %v604 = vpop.f32.mrb[0].mxu0
    %v605 = vadd.f32 0.0, %v604
    %v606 = vpop.f32.mrb[0].mxu0
    %607 = vdwg.mxu0
    %v608 = vadd.f32 %v537, %v605
    %v609 = vxor.u32 %v608, 2147483648
    %v610 = vmul.f32 %v609, 1.442695
    %v611 = vpow.pop %v610
    %v612 = vadd.f32 %v611, 1.0
    %v613 = vrcp.pop %v612
    %v614 = vmul.f32 1.0, %v613
    %v615 = vtanh.pop %v608
    %616 = vrot.lane.b32.xlu0 %v614, 96
    %v617 = vpop.permute.xlu0 %616
    %618 = vrot.lane.b32.xlu0 %v615, 64
    %v619 = vpop.permute.xlu0 %618
    %620 = vrot.lane.b32.xlu0 %v614, 32
    %v621 = vpop.permute.xlu0 %620
    %v622 = vmul.f32 %v617, %v533
    %v623 = vmul.f32 %v614, %v619
    %v624 = vadd.f32 %v622, %v623
    %v625 = vtanh.pop %v624
    %v626 = vmul.f32 %v621, %v625
    %627 = vst [vmem:[#allocation3 + $0x4] sm:$0x1] %v626
    %v628 = vld [vmem:[#allocation2 + $0x5] sm:$0x1]
    %629 = vmatprep.subr.mxu0 0.0
    %630 = vmatpush1.msra.mxu0 %v157
    %631 = vmatprep.subr.mxu0 0.0
    %632 = vmatpush1.msra.mxu0 %v158
    %633 = vmatprep.subr.mxu0 0.0
    %634 = vmatpush1.msra.mxu0 %v159
    %635 = vmatprep.subr.mxu0 0.0
    %636 = vmatpush1.msra.mxu0 %v160
    %637 = vmatprep.subr.mxu0 0.0
    %638 = vmatpush1.msra.mxu0 %v161
    %639 = vmatprep.subr.mxu0 0.0
    %640 = vmatpush1.msra.mxu0 %v162
    %641 = vmatprep.subr.mxu0 0.0
    %642 = vmatpush1.msra.mxu0 %v163
    %643 = vmatprep.subr.mxu0 0.0
    %644 = vmatpush1.msra.mxu0 %v164
    %645 = vmatprep.subr.mxu0 0.0
    %646 = vmatpush1.msra.mxu0 %v165
    %647 = vmatprep.subr.mxu0 0.0
    %648 = vmatpush1.msra.mxu0 %v166
    %649 = vmatprep.subr.mxu0 0.0
    %650 = vmatpush1.msra.mxu0 %v167
    %651 = vmatprep.subr.mxu0 0.0
    %652 = vmatpush1.msra.mxu0 %v168
    %653 = vmatprep.subr.mxu0 0.0
    %654 = vmatpush1.msra.mxu0 %v169
    %655 = vmatprep.subr.mxu0 0.0
    %656 = vmatpush1.msra.mxu0 %v170
    %657 = vmatprep.subr.mxu0 0.0
    %658 = vmatpush1.msra.mxu0 %v171
    %659 = vmatprep.subr.mxu0 0.0
    %660 = vmatpush1.msra.mxu0 %v172
    %661 = vmatprep.subr.mxu0 0.0
    %662 = vmatpush1.msra.mxu0 0.0
    %663 = vmatprep.subr.mxu0 0.0
    %664 = vmatpush1.msra.mxu0 0.0
    %665 = vmatprep.subr.mxu0 0.0
    %666 = vmatpush1.msra.mxu0 0.0
    %667 = vmatprep.subr.mxu0 0.0
    %668 = vmatpush1.msra.mxu0 0.0
    %669 = vmatprep.subr.mxu0 0.0
    %670 = vmatpush1.msra.mxu0 0.0
    %671 = vmatprep.subr.mxu0 0.0
    %672 = vmatpush1.msra.mxu0 0.0
    %673 = vmatprep.subr.mxu0 0.0
    %674 = vmatpush1.msra.mxu0 0.0
    %675 = vmatprep.subr.mxu0 0.0
    %676 = vmatpush1.msra.mxu0 0.0
    %677 = vmatprep.subr.mxu0 0.0
    %678 = vmatpush1.msra.mxu0 0.0
    %679 = vmatprep.subr.mxu0 0.0
    %680 = vmatpush1.msra.mxu0 0.0
    %681 = vmatprep.subr.mxu0 0.0
    %682 = vmatpush1.msra.mxu0 0.0
    %683 = vmatprep.subr.mxu0 0.0
    %684 = vmatpush1.msra.mxu0 0.0
    %685 = vmatprep.subr.mxu0 0.0
    %686 = vmatpush1.msra.mxu0 0.0
    %687 = vmatprep.subr.mxu0 0.0
    %688 = vmatpush1.msra.mxu0 0.0
    %689 = vmatprep.subr.mxu0 0.0
    %690 = vmatpush1.msra.mxu0 0.0
    %691 = vmatprep.subr.mxu0 0.0
    %692 = vmatpush1.msra.mxu0 0.0
    %693 = vmatprep.mubr.f32.mxu0 0.0
    %694 = vmatmul.mubr.f32.gmra.mrb[0].mxu0 %v626
    %v695 = vpop.f32.mrb[0].mxu0
    %v696 = vadd.f32 0.0, %v695
    %v697 = vpop.f32.mrb[0].mxu0
    %698 = vdwg.mxu0
    %v699 = vadd.f32 %v628, %v696
    %v700 = vxor.u32 %v699, 2147483648
    %v701 = vmul.f32 %v700, 1.442695
    %v702 = vpow.pop %v701
    %v703 = vadd.f32 %v702, 1.0
    %v704 = vrcp.pop %v703
    %v705 = vmul.f32 1.0, %v704
    %v706 = vtanh.pop %v699
    %707 = vrot.lane.b32.xlu0 %v705, 96
    %v708 = vpop.permute.xlu0 %707
    %709 = vrot.lane.b32.xlu0 %v706, 64
    %v710 = vpop.permute.xlu0 %709
    %711 = vrot.lane.b32.xlu0 %v705, 32
    %v712 = vpop.permute.xlu0 %711
    %v713 = vmul.f32 %v708, %v624
    %v714 = vmul.f32 %v705, %v710
    %v715 = vadd.f32 %v713, %v714
    %v716 = vtanh.pop %v715
    %v717 = vmul.f32 %v712, %v716
    %718 = vst [vmem:[#allocation3 + $0x5] sm:$0x1] %v717
    %v719 = vld [vmem:[#allocation2 + $0x6] sm:$0x1]
    %720 = vmatprep.subr.mxu0 0.0
    %721 = vmatpush1.msra.mxu0 %v157
    %722 = vmatprep.subr.mxu0 0.0
    %723 = vmatpush1.msra.mxu0 %v158
    %724 = vmatprep.subr.mxu0 0.0
    %725 = vmatpush1.msra.mxu0 %v159
    %726 = vmatprep.subr.mxu0 0.0
    %727 = vmatpush1.msra.mxu0 %v160
    %728 = vmatprep.subr.mxu0 0.0
    %729 = vmatpush1.msra.mxu0 %v161
    %730 = vmatprep.subr.mxu0 0.0
    %731 = vmatpush1.msra.mxu0 %v162
    %732 = vmatprep.subr.mxu0 0.0
    %733 = vmatpush1.msra.mxu0 %v163
    %734 = vmatprep.subr.mxu0 0.0
    %735 = vmatpush1.msra.mxu0 %v164
    %736 = vmatprep.subr.mxu0 0.0
    %737 = vmatpush1.msra.mxu0 %v165
    %738 = vmatprep.subr.mxu0 0.0
    %739 = vmatpush1.msra.mxu0 %v166
    %740 = vmatprep.subr.mxu0 0.0
    %741 = vmatpush1.msra.mxu0 %v167
    %742 = vmatprep.subr.mxu0 0.0
    %743 = vmatpush1.msra.mxu0 %v168
    %744 = vmatprep.subr.mxu0 0.0
    %745 = vmatpush1.msra.mxu0 %v169
    %746 = vmatprep.subr.mxu0 0.0
    %747 = vmatpush1.msra.mxu0 %v170
    %748 = vmatprep.subr.mxu0 0.0
    %749 = vmatpush1.msra.mxu0 %v171
    %750 = vmatprep.subr.mxu0 0.0
    %751 = vmatpush1.msra.mxu0 %v172
    %752 = vmatprep.subr.mxu0 0.0
    %753 = vmatpush1.msra.mxu0 0.0
    %754 = vmatprep.subr.mxu0 0.0
    %755 = vmatpush1.msra.mxu0 0.0
    %756 = vmatprep.subr.mxu0 0.0
    %757 = vmatpush1.msra.mxu0 0.0
    %758 = vmatprep.subr.mxu0 0.0
    %759 = vmatpush1.msra.mxu0 0.0
    %760 = vmatprep.subr.mxu0 0.0
    %761 = vmatpush1.msra.mxu0 0.0
    %762 = vmatprep.subr.mxu0 0.0
    %763 = vmatpush1.msra.mxu0 0.0
    %764 = vmatprep.subr.mxu0 0.0
    %765 = vmatpush1.msra.mxu0 0.0
    %766 = vmatprep.subr.mxu0 0.0
    %767 = vmatpush1.msra.mxu0 0.0
    %768 = vmatprep.subr.mxu0 0.0
    %769 = vmatpush1.msra.mxu0 0.0
    %770 = vmatprep.subr.mxu0 0.0
    %771 = vmatpush1.msra.mxu0 0.0
    %772 = vmatprep.subr.mxu0 0.0
    %773 = vmatpush1.msra.mxu0 0.0
    %774 = vmatprep.subr.mxu0 0.0
    %775 = vmatpush1.msra.mxu0 0.0
    %776 = vmatprep.subr.mxu0 0.0
    %777 = vmatpush1.msra.mxu0 0.0
    %778 = vmatprep.subr.mxu0 0.0
    %779 = vmatpush1.msra.mxu0 0.0
    %780 = vmatprep.subr.mxu0 0.0
    %781 = vmatpush1.msra.mxu0 0.0
    %782 = vmatprep.subr.mxu0 0.0
    %783 = vmatpush1.msra.mxu0 0.0
    %784 = vmatprep.mubr.f32.mxu0 0.0
    %785 = vmatmul.mubr.f32.gmra.mrb[0].mxu0 %v717
    %v786 = vpop.f32.mrb[0].mxu0
    %v787 = vadd.f32 0.0, %v786
    %v788 = vpop.f32.mrb[0].mxu0
    %789 = vdwg.mxu0
    %v790 = vadd.f32 %v719, %v787
    %v791 = vxor.u32 %v790, 2147483648
    %v792 = vmul.f32 %v791, 1.442695
    %v793 = vpow.pop %v792
    %v794 = vadd.f32 %v793, 1.0
    %v795 = vrcp.pop %v794
    %v796 = vmul.f32 1.0, %v795
    %v797 = vtanh.pop %v790
    %798 = vrot.lane.b32.xlu0 %v796, 96
    %v799 = vpop.permute.xlu0 %798
    %800 = vrot.lane.b32.xlu0 %v797, 64
    %v801 = vpop.permute.xlu0 %800
    %802 = vrot.lane.b32.xlu0 %v796, 32
    %v803 = vpop.permute.xlu0 %802
    %v804 = vmul.f32 %v799, %v715
    %v805 = vmul.f32 %v796, %v801
    %v806 = vadd.f32 %v804, %v805
    %v807 = vtanh.pop %v806
    %v808 = vmul.f32 %v803, %v807
    %809 = vst [vmem:[#allocation3 + $0x6] sm:$0x1] %v808
    %v810 = vld [vmem:[#allocation2 + $0x7] sm:$0x1]
    %811 = vmatprep.subr.mxu0 0.0
    %812 = vmatpush1.msra.mxu0 %v157
    %813 = vmatprep.subr.mxu0 0.0
    %814 = vmatpush1.msra.mxu0 %v158
    %815 = vmatprep.subr.mxu0 0.0
    %816 = vmatpush1.msra.mxu0 %v159
    %817 = vmatprep.subr.mxu0 0.0
    %818 = vmatpush1.msra.mxu0 %v160
    %819 = vmatprep.subr.mxu0 0.0
    %820 = vmatpush1.msra.mxu0 %v161
    %821 = vmatprep.subr.mxu0 0.0
    %822 = vmatpush1.msra.mxu0 %v162
    %823 = vmatprep.subr.mxu0 0.0
    %824 = vmatpush1.msra.mxu0 %v163
    %825 = vmatprep.subr.mxu0 0.0
    %826 = vmatpush1.msra.mxu0 %v164
    %827 = vmatprep.subr.mxu0 0.0
    %828 = vmatpush1.msra.mxu0 %v165
    %829 = vmatprep.subr.mxu0 0.0
    %830 = vmatpush1.msra.mxu0 %v166
    %831 = vmatprep.subr.mxu0 0.0
    %832 = vmatpush1.msra.mxu0 %v167
    %833 = vmatprep.subr.mxu0 0.0
    %834 = vmatpush1.msra.mxu0 %v168
    %835 = vmatprep.subr.mxu0 0.0
    %836 = vmatpush1.msra.mxu0 %v169
    %837 = vmatprep.subr.mxu0 0.0
    %838 = vmatpush1.msra.mxu0 %v170
    %839 = vmatprep.subr.mxu0 0.0
    %840 = vmatpush1.msra.mxu0 %v171
    %841 = vmatprep.subr.mxu0 0.0
    %842 = vmatpush1.msra.mxu0 %v172
    %843 = vmatprep.subr.mxu0 0.0
    %844 = vmatpush1.msra.mxu0 0.0
    %845 = vmatprep.subr.mxu0 0.0
    %846 = vmatpush1.msra.mxu0 0.0
    %847 = vmatprep.subr.mxu0 0.0
    %848 = vmatpush1.msra.mxu0 0.0
    %849 = vmatprep.subr.mxu0 0.0
    %850 = vmatpush1.msra.mxu0 0.0
    %851 = vmatprep.subr.mxu0 0.0
    %852 = vmatpush1.msra.mxu0 0.0
    %853 = vmatprep.subr.mxu0 0.0
    %854 = vmatpush1.msra.mxu0 0.0
    %855 = vmatprep.subr.mxu0 0.0
    %856 = vmatpush1.msra.mxu0 0.0
    %857 = vmatprep.subr.mxu0 0.0
    %858 = vmatpush1.msra.mxu0 0.0
    %859 = vmatprep.subr.mxu0 0.0
    %860 = vmatpush1.msra.mxu0 0.0
    %861 = vmatprep.subr.mxu0 0.0
    %862 = vmatpush1.msra.mxu0 0.0
    %863 = vmatprep.subr.mxu0 0.0
    %864 = vmatpush1.msra.mxu0 0.0
    %865 = vmatprep.subr.mxu0 0.0
    %866 = vmatpush1.msra.mxu0 0.0
    %867 = vmatprep.subr.mxu0 0.0
    %868 = vmatpush1.msra.mxu0 0.0
    %869 = vmatprep.subr.mxu0 0.0
    %870 = vmatpush1.msra.mxu0 0.0
    %871 = vmatprep.subr.mxu0 0.0
    %872 = vmatpush1.msra.mxu0 0.0
    %873 = vmatprep.subr.mxu0 0.0
    %874 = vmatpush1.msra.mxu0 0.0
    %875 = vmatprep.mubr.f32.mxu0 0.0
    %876 = vmatmul.mubr.f32.gmra.mrb[0].mxu0 %v808
    %v877 = vpop.f32.mrb[0].mxu0
    %v878 = vadd.f32 0.0, %v877
    %v879 = vpop.f32.mrb[0].mxu0
    %880 = vdwg.mxu0
    %v881 = vadd.f32 %v810, %v878
    %v882 = vxor.u32 %v881, 2147483648
    %v883 = vmul.f32 %v882, 1.442695
    %v884 = vpow.pop %v883
    %v885 = vadd.f32 %v884, 1.0
    %v886 = vrcp.pop %v885
    %v887 = vmul.f32 1.0, %v886
    %v888 = vtanh.pop %v881
    %889 = vrot.lane.b32.xlu0 %v887, 96
    %v890 = vpop.permute.xlu0 %889
    %891 = vrot.lane.b32.xlu0 %v888, 64
    %v892 = vpop.permute.xlu0 %891
    %893 = vrot.lane.b32.xlu0 %v887, 32
    %v894 = vpop.permute.xlu0 %893
    %v895 = vmul.f32 %v890, %v806
    %v896 = vmul.f32 %v887, %v892
    %v897 = vadd.f32 %v895, %v896
    %v898 = vtanh.pop %v897
    %v899 = vmul.f32 %v894, %v898
    %900 = vst [vmem:[#allocation3 + $0x7] sm:$0x1] %v899
    %v901 = vld [vmem:[#allocation2 + $0x8] sm:$0x1]
    %902 = vmatprep.subr.mxu0 0.0
    %903 = vmatpush1.msra.mxu0 %v157
    %904 = vmatprep.subr.mxu0 0.0
    %905 = vmatpush1.msra.mxu0 %v158
    %906 = vmatprep.subr.mxu0 0.0
    %907 = vmatpush1.msra.mxu0 %v159
    %908 = vmatprep.subr.mxu0 0.0
    %909 = vmatpush1.msra.mxu0 %v160
    %910 = vmatprep.subr.mxu0 0.0
    %911 = vmatpush1.msra.mxu0 %v161
    %912 = vmatprep.subr.mxu0 0.0
    %913 = vmatpush1.msra.mxu0 %v162
    %914 = vmatprep.subr.mxu0 0.0
    %915 = vmatpush1.msra.mxu0 %v163
    %916 = vmatprep.subr.mxu0 0.0
    %917 = vmatpush1.msra.mxu0 %v164
    %918 = vmatprep.subr.mxu0 0.0
    %919 = vmatpush1.msra.mxu0 %v165
    %920 = vmatprep.subr.mxu0 0.0
    %921 = vmatpush1.msra.mxu0 %v166
    %922 = vmatprep.subr.mxu0 0.0
    %923 = vmatpush1.msra.mxu0 %v167
    %924 = vmatprep.subr.mxu0 0.0
    %925 = vmatpush1.msra.mxu0 %v168
    %926 = vmatprep.subr.mxu0 0.0
    %927 = vmatpush1.msra.mxu0 %v169
    %928 = vmatprep.subr.mxu0 0.0
    %929 = vmatpush1.msra.mxu0 %v170
    %930 = vmatprep.subr.mxu0 0.0
    %931 = vmatpush1.msra.mxu0 %v171
    %932 = vmatprep.subr.mxu0 0.0
    %933 = vmatpush1.msra.mxu0 %v172
    %934 = vmatprep.subr.mxu0 0.0
    %935 = vmatpush1.msra.mxu0 0.0
    %936 = vmatprep.subr.mxu0 0.0
    %937 = vmatpush1.msra.mxu0 0.0
    %938 = vmatprep.subr.mxu0 0.0
    %939 = vmatpush1.msra.mxu0 0.0
    %940 = vmatprep.subr.mxu0 0.0
    %941 = vmatpush1.msra.mxu0 0.0
    %942 = vmatprep.subr.mxu0 0.0
    %943 = vmatpush1.msra.mxu0 0.0
    %944 = vmatprep.subr.mxu0 0.0
    %945 = vmatpush1.msra.mxu0 0.0
    %946 = vmatprep.subr.mxu0 0.0
    %947 = vmatpush1.msra.mxu0 0.0
    %948 = vmatprep.subr.mxu0 0.0
    %949 = vmatpush1.msra.mxu0 0.0
    %950 = vmatprep.subr.mxu0 0.0
    %951 = vmatpush1.msra.mxu0 0.0
    %952 = vmatprep.subr.mxu0 0.0
    %953 = vmatpush1.msra.mxu0 0.0
    %954 = vmatprep.subr.mxu0 0.0
    %955 = vmatpush1.msra.mxu0 0.0
    %956 = vmatprep.subr.mxu0 0.0
    %957 = vmatpush1.msra.mxu0 0.0
    %958 = vmatprep.subr.mxu0 0.0
    %959 = vmatpush1.msra.mxu0 0.0
    %960 = vmatprep.subr.mxu0 0.0
    %961 = vmatpush1.msra.mxu0 0.0
    %962 = vmatprep.subr.mxu0 0.0
    %963 = vmatpush1.msra.mxu0 0.0
    %964 = vmatprep.subr.mxu0 0.0
    %965 = vmatpush1.msra.mxu0 0.0
    %966 = vmatprep.mubr.f32.mxu0 0.0
    %967 = vmatmul.mubr.f32.gmra.mrb[0].mxu0 %v899
    %v968 = vpop.f32.mrb[0].mxu0
    %v969 = vadd.f32 0.0, %v968
    %v970 = vpop.f32.mrb[0].mxu0
    %971 = vdwg.mxu0
    %v972 = vadd.f32 %v901, %v969
    %v973 = vxor.u32 %v972, 2147483648
    %v974 = vmul.f32 %v973, 1.442695
    %v975 = vpow.pop %v974
    %v976 = vadd.f32 %v975, 1.0
    %v977 = vrcp.pop %v976
    %v978 = vmul.f32 1.0, %v977
    %v979 = vtanh.pop %v972
    %980 = vrot.lane.b32.xlu0 %v978, 96
    %v981 = vpop.permute.xlu0 %980
    %982 = vrot.lane.b32.xlu0 %v979, 64
    %v983 = vpop.permute.xlu0 %982
    %984 = vrot.lane.b32.xlu0 %v978, 32
    %v985 = vpop.permute.xlu0 %984
    %v986 = vmul.f32 %v981, %v897
    %v987 = vmul.f32 %v978, %v983
    %v988 = vadd.f32 %v986, %v987
    %v989 = vtanh.pop %v988
    %v990 = vmul.f32 %v985, %v989
    %991 = vst [vmem:[#allocation3 + $0x8] sm:$0x1] %v990
    %v992 = vld [vmem:[#allocation2 + $0x9] sm:$0x1]
    %993 = vmatprep.subr.mxu0 0.0
    %994 = vmatpush1.msra.mxu0 %v157
    %995 = vmatprep.subr.mxu0 0.0
    %996 = vmatpush1.msra.mxu0 %v158
    %997 = vmatprep.subr.mxu0 0.0
    %998 = vmatpush1.msra.mxu0 %v159
    %999 = vmatprep.subr.mxu0 0.0
    %1000 = vmatpush1.msra.mxu0 %v160
    %1001 = vmatprep.subr.mxu0 0.0
    %1002 = vmatpush1.msra.mxu0 %v161
    %1003 = vmatprep.subr.mxu0 0.0
    %1004 = vmatpush1.msra.mxu0 %v162
    %1005 = vmatprep.subr.mxu0 0.0
    %1006 = vmatpush1.msra.mxu0 %v163
    %1007 = vmatprep.subr.mxu0 0.0
    %1008 = vmatpush1.msra.mxu0 %v164
    %1009 = vmatprep.subr.mxu0 0.0
    %1010 = vmatpush1.msra.mxu0 %v165
    %1011 = vmatprep.subr.mxu0 0.0
    %1012 = vmatpush1.msra.mxu0 %v166
    %1013 = vmatprep.subr.mxu0 0.0
    %1014 = vmatpush1.msra.mxu0 %v167
    %1015 = vmatprep.subr.mxu0 0.0
    %1016 = vmatpush1.msra.mxu0 %v168
    %1017 = vmatprep.subr.mxu0 0.0
    %1018 = vmatpush1.msra.mxu0 %v169
    %1019 = vmatprep.subr.mxu0 0.0
    %1020 = vmatpush1.msra.mxu0 %v170
    %1021 = vmatprep.subr.mxu0 0.0
    %1022 = vmatpush1.msra.mxu0 %v171
    %1023 = vmatprep.subr.mxu0 0.0
    %1024 = vmatpush1.msra.mxu0 %v172
    %1025 = vmatprep.subr.mxu0 0.0
    %1026 = vmatpush1.msra.mxu0 0.0
    %1027 = vmatprep.subr.mxu0 0.0
    %1028 = vmatpush1.msra.mxu0 0.0
    %1029 = vmatprep.subr.mxu0 0.0
    %1030 = vmatpush1.msra.mxu0 0.0
    %1031 = vmatprep.subr.mxu0 0.0
    %1032 = vmatpush1.msra.mxu0 0.0
    %1033 = vmatprep.subr.mxu0 0.0
    %1034 = vmatpush1.msra.mxu0 0.0
    %1035 = vmatprep.subr.mxu0 0.0
    %1036 = vmatpush1.msra.mxu0 0.0
    %1037 = vmatprep.subr.mxu0 0.0
    %1038 = vmatpush1.msra.mxu0 0.0
    %1039 = vmatprep.subr.mxu0 0.0
    %1040 = vmatpush1.msra.mxu0 0.0
    %1041 = vmatprep.subr.mxu0 0.0
    %1042 = vmatpush1.msra.mxu0 0.0
    %1043 = vmatprep.subr.mxu0 0.0
    %1044 = vmatpush1.msra.mxu0 0.0
    %1045 = vmatprep.subr.mxu0 0.0
    %1046 = vmatpush1.msra.mxu0 0.0
    %1047 = vmatprep.subr.mxu0 0.0
    %1048 = vmatpush1.msra.mxu0 0.0
    %1049 = vmatprep.subr.mxu0 0.0
    %1050 = vmatpush1.msra.mxu0 0.0
    %1051 = vmatprep.subr.mxu0 0.0
    %1052 = vmatpush1.msra.mxu0 0.0
    %1053 = vmatprep.subr.mxu0 0.0
    %1054 = vmatpush1.msra.mxu0 0.0
    %1055 = vmatprep.subr.mxu0 0.0
    %1056 = vmatpush1.msra.mxu0 0.0
    %1057 = vmatprep.mubr.f32.mxu0 0.0
    %1058 = vmatmul.mubr.f32.gmra.mrb[0].mxu0 %v990
    %v1059 = vpop.f32.mrb[0].mxu0
    %v1060 = vadd.f32 0.0, %v1059
    %v1061 = vpop.f32.mrb[0].mxu0
    %1062 = vdwg.mxu0
    %v1063 = vadd.f32 %v992, %v1060
    %v1064 = vxor.u32 %v1063, 2147483648
    %v1065 = vmul.f32 %v1064, 1.442695
    %v1066 = vpow.pop %v1065
    %v1067 = vadd.f32 %v1066, 1.0
    %v1068 = vrcp.pop %v1067
    %v1069 = vmul.f32 1.0, %v1068
    %v1070 = vtanh.pop %v1063
    %1071 = vrot.lane.b32.xlu0 %v1069, 96
    %v1072 = vpop.permute.xlu0 %1071
    %1073 = vrot.lane.b32.xlu0 %v1070, 64
    %v1074 = vpop.permute.xlu0 %1073
    %1075 = vrot.lane.b32.xlu0 %v1069, 32
    %v1076 = vpop.permute.xlu0 %1075
    %v1077 = vmul.f32 %v1072, %v988
    %v1078 = vmul.f32 %v1069, %v1074
    %v1079 = vadd.f32 %v1077, %v1078
    %v1080 = vtanh.pop %v1079
    %v1081 = vmul.f32 %v1076, %v1080
    %1082 = vst [vmem:[#allocation3 + $0x9] sm:$0x1] %v1081
    %v1083 = vld [vmem:[#allocation2 + $0xa] sm:$0x1]
    %1084 = vmatprep.subr.mxu0 0.0
    %1085 = vmatpush1.msra.mxu0 %v157
    %1086 = vmatprep.subr.mxu0 0.0
    %1087 = vmatpush1.msra.mxu0 %v158
    %1088 = vmatprep.subr.mxu0 0.0
    %1089 = vmatpush1.msra.mxu0 %v159
    %1090 = vmatprep.subr.mxu0 0.0
    %1091 = vmatpush1.msra.mxu0 %v160
    %1092 = vmatprep.subr.mxu0 0.0
    %1093 = vmatpush1.msra.mxu0 %v161
    %1094 = vmatprep.subr.mxu0 0.0
    %1095 = vmatpush1.msra.mxu0 %v162
    %1096 = vmatprep.subr.mxu0 0.0
    %1097 = vmatpush1.msra.mxu0 %v163
    %1098 = vmatprep.subr.mxu0 0.0
    %1099 = vmatpush1.msra.mxu0 %v164
    %1100 = vmatprep.subr.mxu0 0.0
    %1101 = vmatpush1.msra.mxu0 %v165
    %1102 = vmatprep.subr.mxu0 0.0
    %1103 = vmatpush1.msra.mxu0 %v166
    %1104 = vmatprep.subr.mxu0 0.0
    %1105 = vmatpush1.msra.mxu0 %v167
    %1106 = vmatprep.subr.mxu0 0.0
    %1107 = vmatpush1.msra.mxu0 %v168
    %1108 = vmatprep.subr.mxu0 0.0
    %1109 = vmatpush1.msra.mxu0 %v169
    %1110 = vmatprep.subr.mxu0 0.0
    %1111 = vmatpush1.msra.mxu0 %v170
    %1112 = vmatprep.subr.mxu0 0.0
    %1113 = vmatpush1.msra.mxu0 %v171
    %1114 = vmatprep.subr.mxu0 0.0
    %1115 = vmatpush1.msra.mxu0 %v172
    %1116 = vmatprep.subr.mxu0 0.0
    %1117 = vmatpush1.msra.mxu0 0.0
    %1118 = vmatprep.subr.mxu0 0.0
    %1119 = vmatpush1.msra.mxu0 0.0
    %1120 = vmatprep.subr.mxu0 0.0
    %1121 = vmatpush1.msra.mxu0 0.0
    %1122 = vmatprep.subr.mxu0 0.0
    %1123 = vmatpush1.msra.mxu0 0.0
    %1124 = vmatprep.subr.mxu0 0.0
    %1125 = vmatpush1.msra.mxu0 0.0
    %1126 = vmatprep.subr.mxu0 0.0
    %1127 = vmatpush1.msra.mxu0 0.0
    %1128 = vmatprep.subr.mxu0 0.0
    %1129 = vmatpush1.msra.mxu0 0.0
    %1130 = vmatprep.subr.mxu0 0.0
    %1131 = vmatpush1.msra.mxu0 0.0
    %1132 = vmatprep.subr.mxu0 0.0
    %1133 = vmatpush1.msra.mxu0 0.0
    %1134 = vmatprep.subr.mxu0 0.0
    %1135 = vmatpush1.msra.mxu0 0.0
    %1136 = vmatprep.subr.mxu0 0.0
    %1137 = vmatpush1.msra.mxu0 0.0
    %1138 = vmatprep.subr.mxu0 0.0
    %1139 = vmatpush1.msra.mxu0 0.0
    %1140 = vmatprep.subr.mxu0 0.0
    %1141 = vmatpush1.msra.mxu0 0.0
    %1142 = vmatprep.subr.mxu0 0.0
    %1143 = vmatpush1.msra.mxu0 0.0
    %1144 = vmatprep.subr.mxu0 0.0
    %1145 = vmatpush1.msra.mxu0 0.0
    %1146 = vmatprep.subr.mxu0 0.0
    %1147 = vmatpush1.msra.mxu0 0.0
    %1148 = vmatprep.mubr.f32.mxu0 0.0
    %1149 = vmatmul.mubr.f32.gmra.mrb[0].mxu0 %v1081
    %v1150 = vpop.f32.mrb[0].mxu0
    %v1151 = vadd.f32 0.0, %v1150
    %v1152 = vpop.f32.mrb[0].mxu0
    %1153 = vdwg.mxu0
    %v1154 = vadd.f32 %v1083, %v1151
    %v1155 = vxor.u32 %v1154, 2147483648
    %v1156 = vmul.f32 %v1155, 1.442695
    %v1157 = vpow.pop %v1156
    %v1158 = vadd.f32 %v1157, 1.0
    %v1159 = vrcp.pop %v1158
    %v1160 = vmul.f32 1.0, %v1159
    %v1161 = vtanh.pop %v1154
    %1162 = vrot.lane.b32.xlu0 %v1160, 96
    %v1163 = vpop.permute.xlu0 %1162
    %1164 = vrot.lane.b32.xlu0 %v1161, 64
    %v1165 = vpop.permute.xlu0 %1164
    %1166 = vrot.lane.b32.xlu0 %v1160, 32
    %v1167 = vpop.permute.xlu0 %1166
    %v1168 = vmul.f32 %v1163, %v1079
    %v1169 = vmul.f32 %v1160, %v1165
    %v1170 = vadd.f32 %v1168, %v1169
    %v1171 = vtanh.pop %v1170
    %v1172 = vmul.f32 %v1167, %v1171
    %1173 = vst [vmem:[#allocation3 + $0xa] sm:$0x1] %v1172
    %v1174 = vld [vmem:[#allocation2 + $0xb] sm:$0x1]
    %1175 = vmatprep.subr.mxu0 0.0
    %1176 = vmatpush1.msra.mxu0 %v157
    %1177 = vmatprep.subr.mxu0 0.0
    %1178 = vmatpush1.msra.mxu0 %v158
    %1179 = vmatprep.subr.mxu0 0.0
    %1180 = vmatpush1.msra.mxu0 %v159
    %1181 = vmatprep.subr.mxu0 0.0
    %1182 = vmatpush1.msra.mxu0 %v160
    %1183 = vmatprep.subr.mxu0 0.0
    %1184 = vmatpush1.msra.mxu0 %v161
    %1185 = vmatprep.subr.mxu0 0.0
    %1186 = vmatpush1.msra.mxu0 %v162
    %1187 = vmatprep.subr.mxu0 0.0
    %1188 = vmatpush1.msra.mxu0 %v163
    %1189 = vmatprep.subr.mxu0 0.0
    %1190 = vmatpush1.msra.mxu0 %v164
    %1191 = vmatprep.subr.mxu0 0.0
    %1192 = vmatpush1.msra.mxu0 %v165
    %1193 = vmatprep.subr.mxu0 0.0
    %1194 = vmatpush1.msra.mxu0 %v166
    %1195 = vmatprep.subr.mxu0 0.0
    %1196 = vmatpush1.msra.mxu0 %v167
    %1197 = vmatprep.subr.mxu0 0.0
    %1198 = vmatpush1.msra.mxu0 %v168
    %1199 = vmatprep.subr.mxu0 0.0
    %1200 = vmatpush1.msra.mxu0 %v169
    %1201 = vmatprep.subr.mxu0 0.0
    %1202 = vmatpush1.msra.mxu0 %v170
    %1203 = vmatprep.subr.mxu0 0.0
    %1204 = vmatpush1.msra.mxu0 %v171
    %1205 = vmatprep.subr.mxu0 0.0
    %1206 = vmatpush1.msra.mxu0 %v172
    %1207 = vmatprep.subr.mxu0 0.0
    %1208 = vmatpush1.msra.mxu0 0.0
    %1209 = vmatprep.subr.mxu0 0.0
    %1210 = vmatpush1.msra.mxu0 0.0
    %1211 = vmatprep.subr.mxu0 0.0
    %1212 = vmatpush1.msra.mxu0 0.0
    %1213 = vmatprep.subr.mxu0 0.0
    %1214 = vmatpush1.msra.mxu0 0.0
    %1215 = vmatprep.subr.mxu0 0.0
    %1216 = vmatpush1.msra.mxu0 0.0
    %1217 = vmatprep.subr.mxu0 0.0
    %1218 = vmatpush1.msra.mxu0 0.0
    %1219 = vmatprep.subr.mxu0 0.0
    %1220 = vmatpush1.msra.mxu0 0.0
    %1221 = vmatprep.subr.mxu0 0.0
    %1222 = vmatpush1.msra.mxu0 0.0
    %1223 = vmatprep.subr.mxu0 0.0
    %1224 = vmatpush1.msra.mxu0 0.0
    %1225 = vmatprep.subr.mxu0 0.0
    %1226 = vmatpush1.msra.mxu0 0.0
    %1227 = vmatprep.subr.mxu0 0.0
    %1228 = vmatpush1.msra.mxu0 0.0
    %1229 = vmatprep.subr.mxu0 0.0
    %1230 = vmatpush1.msra.mxu0 0.0
    %1231 = vmatprep.subr.mxu0 0.0
    %1232 = vmatpush1.msra.mxu0 0.0
    %1233 = vmatprep.subr.mxu0 0.0
    %1234 = vmatpush1.msra.mxu0 0.0
    %1235 = vmatprep.subr.mxu0 0.0
    %1236 = vmatpush1.msra.mxu0 0.0
    %1237 = vmatprep.subr.mxu0 0.0
    %1238 = vmatpush1.msra.mxu0 0.0
    %1239 = vmatprep.mubr.f32.mxu0 0.0
    %1240 = vmatmul.mubr.f32.gmra.mrb[0].mxu0 %v1172
    %v1241 = vpop.f32.mrb[0].mxu0
    %v1242 = vadd.f32 0.0, %v1241
    %v1243 = vpop.f32.mrb[0].mxu0
    %1244 = vdwg.mxu0
    %v1245 = vadd.f32 %v1174, %v1242
    %v1246 = vxor.u32 %v1245, 2147483648
    %v1247 = vmul.f32 %v1246, 1.442695
    %v1248 = vpow.pop %v1247
    %v1249 = vadd.f32 %v1248, 1.0
    %v1250 = vrcp.pop %v1249
    %v1251 = vmul.f32 1.0, %v1250
    %v1252 = vtanh.pop %v1245
    %1253 = vrot.lane.b32.xlu0 %v1251, 96
    %v1254 = vpop.permute.xlu0 %1253
    %1255 = vrot.lane.b32.xlu0 %v1252, 64
    %v1256 = vpop.permute.xlu0 %1255
    %1257 = vrot.lane.b32.xlu0 %v1251, 32
    %v1258 = vpop.permute.xlu0 %1257
    %v1259 = vmul.f32 %v1254, %v1170
    %v1260 = vmul.f32 %v1251, %v1256
    %v1261 = vadd.f32 %v1259, %v1260
    %v1262 = vtanh.pop %v1261
    %v1263 = vmul.f32 %v1258, %v1262
    %1264 = vst [vmem:[#allocation3 + $0xb] sm:$0x1] %v1263
    %v1265 = vld [vmem:[#allocation2 + $0xc] sm:$0x1]
    %1266 = vmatprep.subr.mxu0 0.0
    %1267 = vmatpush1.msra.mxu0 %v157
    %1268 = vmatprep.subr.mxu0 0.0
    %1269 = vmatpush1.msra.mxu0 %v158
    %1270 = vmatprep.subr.mxu0 0.0
    %1271 = vmatpush1.msra.mxu0 %v159
    %1272 = vmatprep.subr.mxu0 0.0
    %1273 = vmatpush1.msra.mxu0 %v160
    %1274 = vmatprep.subr.mxu0 0.0
    %1275 = vmatpush1.msra.mxu0 %v161
    %1276 = vmatprep.subr.mxu0 0.0
    %1277 = vmatpush1.msra.mxu0 %v162
    %1278 = vmatprep.subr.mxu0 0.0
    %1279 = vmatpush1.msra.mxu0 %v163
    %1280 = vmatprep.subr.mxu0 0.0
    %1281 = vmatpush1.msra.mxu0 %v164
    %1282 = vmatprep.subr.mxu0 0.0
    %1283 = vmatpush1.msra.mxu0 %v165
    %1284 = vmatprep.subr.mxu0 0.0
    %1285 = vmatpush1.msra.mxu0 %v166
    %1286 = vmatprep.subr.mxu0 0.0
    %1287 = vmatpush1.msra.mxu0 %v167
    %1288 = vmatprep.subr.mxu0 0.0
    %1289 = vmatpush1.msra.mxu0 %v168
    %1290 = vmatprep.subr.mxu0 0.0
    %1291 = vmatpush1.msra.mxu0 %v169
    %1292 = vmatprep.subr.mxu0 0.0
    %1293 = vmatpush1.msra.mxu0 %v170
    %1294 = vmatprep.subr.mxu0 0.0
    %1295 = vmatpush1.msra.mxu0 %v171
    %1296 = vmatprep.subr.mxu0 0.0
    %1297 = vmatpush1.msra.mxu0 %v172
    %1298 = vmatprep.subr.mxu0 0.0
    %1299 = vmatpush1.msra.mxu0 0.0
    %1300 = vmatprep.subr.mxu0 0.0
    %1301 = vmatpush1.msra.mxu0 0.0
    %1302 = vmatprep.subr.mxu0 0.0
    %1303 = vmatpush1.msra.mxu0 0.0
    %1304 = vmatprep.subr.mxu0 0.0
    %1305 = vmatpush1.msra.mxu0 0.0
    %1306 = vmatprep.subr.mxu0 0.0
    %1307 = vmatpush1.msra.mxu0 0.0
    %1308 = vmatprep.subr.mxu0 0.0
    %1309 = vmatpush1.msra.mxu0 0.0
    %1310 = vmatprep.subr.mxu0 0.0
    %1311 = vmatpush1.msra.mxu0 0.0
    %1312 = vmatprep.subr.mxu0 0.0
    %1313 = vmatpush1.msra.mxu0 0.0
    %1314 = vmatprep.subr.mxu0 0.0
    %1315 = vmatpush1.msra.mxu0 0.0
    %1316 = vmatprep.subr.mxu0 0.0
    %1317 = vmatpush1.msra.mxu0 0.0
    %1318 = vmatprep.subr.mxu0 0.0
    %1319 = vmatpush1.msra.mxu0 0.0
    %1320 = vmatprep.subr.mxu0 0.0
    %1321 = vmatpush1.msra.mxu0 0.0
    %1322 = vmatprep.subr.mxu0 0.0
    %1323 = vmatpush1.msra.mxu0 0.0
    %1324 = vmatprep.subr.mxu0 0.0
    %1325 = vmatpush1.msra.mxu0 0.0
    %1326 = vmatprep.subr.mxu0 0.0
    %1327 = vmatpush1.msra.mxu0 0.0
    %1328 = vmatprep.subr.mxu0 0.0
    %1329 = vmatpush1.msra.mxu0 0.0
    %1330 = vmatprep.mubr.f32.mxu0 0.0
    %1331 = vmatmul.mubr.f32.gmra.mrb[0].mxu0 %v1263
    %v1332 = vpop.f32.mrb[0].mxu0
    %v1333 = vadd.f32 0.0, %v1332
    %v1334 = vpop.f32.mrb[0].mxu0
    %1335 = vdwg.mxu0
    %v1336 = vadd.f32 %v1265, %v1333
    %v1337 = vxor.u32 %v1336, 2147483648
    %v1338 = vmul.f32 %v1337, 1.442695
    %v1339 = vpow.pop %v1338
    %v1340 = vadd.f32 %v1339, 1.0
    %v1341 = vrcp.pop %v1340
    %v1342 = vmul.f32 1.0, %v1341
    %v1343 = vtanh.pop %v1336
    %1344 = vrot.lane.b32.xlu0 %v1342, 96
    %v1345 = vpop.permute.xlu0 %1344
    %1346 = vrot.lane.b32.xlu0 %v1343, 64
    %v1347 = vpop.permute.xlu0 %1346
    %1348 = vrot.lane.b32.xlu0 %v1342, 32
    %v1349 = vpop.permute.xlu0 %1348
    %v1350 = vmul.f32 %v1345, %v1261
    %v1351 = vmul.f32 %v1342, %v1347
    %v1352 = vadd.f32 %v1350, %v1351
    %v1353 = vtanh.pop %v1352
    %v1354 = vmul.f32 %v1349, %v1353
    %1355 = vst [vmem:[#allocation3 + $0xc] sm:$0x1] %v1354
    %v1356 = vld [vmem:[#allocation2 + $0xd] sm:$0x1]
    %1357 = vmatprep.subr.mxu0 0.0
    %1358 = vmatpush1.msra.mxu0 %v157
    %1359 = vmatprep.subr.mxu0 0.0
    %1360 = vmatpush1.msra.mxu0 %v158
    %1361 = vmatprep.subr.mxu0 0.0
    %1362 = vmatpush1.msra.mxu0 %v159
    %1363 = vmatprep.subr.mxu0 0.0
    %1364 = vmatpush1.msra.mxu0 %v160
    %1365 = vmatprep.subr.mxu0 0.0
    %1366 = vmatpush1.msra.mxu0 %v161
    %1367 = vmatprep.subr.mxu0 0.0
    %1368 = vmatpush1.msra.mxu0 %v162
    %1369 = vmatprep.subr.mxu0 0.0
    %1370 = vmatpush1.msra.mxu0 %v163
    %1371 = vmatprep.subr.mxu0 0.0
    %1372 = vmatpush1.msra.mxu0 %v164
    %1373 = vmatprep.subr.mxu0 0.0
    %1374 = vmatpush1.msra.mxu0 %v165
    %1375 = vmatprep.subr.mxu0 0.0
    %1376 = vmatpush1.msra.mxu0 %v166
    %1377 = vmatprep.subr.mxu0 0.0
    %1378 = vmatpush1.msra.mxu0 %v167
    %1379 = vmatprep.subr.mxu0 0.0
    %1380 = vmatpush1.msra.mxu0 %v168
    %1381 = vmatprep.subr.mxu0 0.0
    %1382 = vmatpush1.msra.mxu0 %v169
    %1383 = vmatprep.subr.mxu0 0.0
    %1384 = vmatpush1.msra.mxu0 %v170
    %1385 = vmatprep.subr.mxu0 0.0
    %1386 = vmatpush1.msra.mxu0 %v171
    %1387 = vmatprep.subr.mxu0 0.0
    %1388 = vmatpush1.msra.mxu0 %v172
    %1389 = vmatprep.subr.mxu0 0.0
    %1390 = vmatpush1.msra.mxu0 0.0
    %1391 = vmatprep.subr.mxu0 0.0
    %1392 = vmatpush1.msra.mxu0 0.0
    %1393 = vmatprep.subr.mxu0 0.0
    %1394 = vmatpush1.msra.mxu0 0.0
    %1395 = vmatprep.subr.mxu0 0.0
    %1396 = vmatpush1.msra.mxu0 0.0
    %1397 = vmatprep.subr.mxu0 0.0
    %1398 = vmatpush1.msra.mxu0 0.0
    %1399 = vmatprep.subr.mxu0 0.0
    %1400 = vmatpush1.msra.mxu0 0.0
    %1401 = vmatprep.subr.mxu0 0.0
    %1402 = vmatpush1.msra.mxu0 0.0
    %1403 = vmatprep.subr.mxu0 0.0
    %1404 = vmatpush1.msra.mxu0 0.0
    %1405 = vmatprep.subr.mxu0 0.0
    %1406 = vmatpush1.msra.mxu0 0.0
    %1407 = vmatprep.subr.mxu0 0.0
    %1408 = vmatpush1.msra.mxu0 0.0
    %1409 = vmatprep.subr.mxu0 0.0
    %1410 = vmatpush1.msra.mxu0 0.0
    %1411 = vmatprep.subr.mxu0 0.0
    %1412 = vmatpush1.msra.mxu0 0.0
    %1413 = vmatprep.subr.mxu0 0.0
    %1414 = vmatpush1.msra.mxu0 0.0
    %1415 = vmatprep.subr.mxu0 0.0
    %1416 = vmatpush1.msra.mxu0 0.0
    %1417 = vmatprep.subr.mxu0 0.0
    %1418 = vmatpush1.msra.mxu0 0.0
    %1419 = vmatprep.subr.mxu0 0.0
    %1420 = vmatpush1.msra.mxu0 0.0
    %1421 = vmatprep.mubr.f32.mxu0 0.0
    %1422 = vmatmul.mubr.f32.gmra.mrb[0].mxu0 %v1354
    %v1423 = vpop.f32.mrb[0].mxu0
    %v1424 = vadd.f32 0.0, %v1423
    %v1425 = vpop.f32.mrb[0].mxu0
    %1426 = vdwg.mxu0
    %v1427 = vadd.f32 %v1356, %v1424
    %v1428 = vxor.u32 %v1427, 2147483648
    %v1429 = vmul.f32 %v1428, 1.442695
    %v1430 = vpow.pop %v1429
    %v1431 = vadd.f32 %v1430, 1.0
    %v1432 = vrcp.pop %v1431
    %v1433 = vmul.f32 1.0, %v1432
    %v1434 = vtanh.pop %v1427
    %1435 = vrot.lane.b32.xlu0 %v1433, 96
    %v1436 = vpop.permute.xlu0 %1435
    %1437 = vrot.lane.b32.xlu0 %v1434, 64
    %v1438 = vpop.permute.xlu0 %1437
    %1439 = vrot.lane.b32.xlu0 %v1433, 32
    %v1440 = vpop.permute.xlu0 %1439
    %v1441 = vmul.f32 %v1436, %v1352
    %v1442 = vmul.f32 %v1433, %v1438
    %v1443 = vadd.f32 %v1441, %v1442
    %v1444 = vtanh.pop %v1443
    %v1445 = vmul.f32 %v1440, %v1444
    %1446 = vst [vmem:[#allocation3 + $0xd] sm:$0x1] %v1445
    %v1447 = vld [vmem:[#allocation2 + $0xe] sm:$0x1]
    %1448 = vmatprep.subr.mxu0 0.0
    %1449 = vmatpush1.msra.mxu0 %v157
    %1450 = vmatprep.subr.mxu0 0.0
    %1451 = vmatpush1.msra.mxu0 %v158
    %1452 = vmatprep.subr.mxu0 0.0
    %1453 = vmatpush1.msra.mxu0 %v159
    %1454 = vmatprep.subr.mxu0 0.0
    %1455 = vmatpush1.msra.mxu0 %v160
    %1456 = vmatprep.subr.mxu0 0.0
    %1457 = vmatpush1.msra.mxu0 %v161
    %1458 = vmatprep.subr.mxu0 0.0
    %1459 = vmatpush1.msra.mxu0 %v162
    %1460 = vmatprep.subr.mxu0 0.0
    %1461 = vmatpush1.msra.mxu0 %v163
    %1462 = vmatprep.subr.mxu0 0.0
    %1463 = vmatpush1.msra.mxu0 %v164
    %1464 = vmatprep.subr.mxu0 0.0
    %1465 = vmatpush1.msra.mxu0 %v165
    %1466 = vmatprep.subr.mxu0 0.0
    %1467 = vmatpush1.msra.mxu0 %v166
    %1468 = vmatprep.subr.mxu0 0.0
    %1469 = vmatpush1.msra.mxu0 %v167
    %1470 = vmatprep.subr.mxu0 0.0
    %1471 = vmatpush1.msra.mxu0 %v168
    %1472 = vmatprep.subr.mxu0 0.0
    %1473 = vmatpush1.msra.mxu0 %v169
    %1474 = vmatprep.subr.mxu0 0.0
    %1475 = vmatpush1.msra.mxu0 %v170
    %1476 = vmatprep.subr.mxu0 0.0
    %1477 = vmatpush1.msra.mxu0 %v171
    %1478 = vmatprep.subr.mxu0 0.0
    %1479 = vmatpush1.msra.mxu0 %v172
    %1480 = vmatprep.subr.mxu0 0.0
    %1481 = vmatpush1.msra.mxu0 0.0
    %1482 = vmatprep.subr.mxu0 0.0
    %1483 = vmatpush1.msra.mxu0 0.0
    %1484 = vmatprep.subr.mxu0 0.0
    %1485 = vmatpush1.msra.mxu0 0.0
    %1486 = vmatprep.subr.mxu0 0.0
    %1487 = vmatpush1.msra.mxu0 0.0
    %1488 = vmatprep.subr.mxu0 0.0
    %1489 = vmatpush1.msra.mxu0 0.0
    %1490 = vmatprep.subr.mxu0 0.0
    %1491 = vmatpush1.msra.mxu0 0.0
    %1492 = vmatprep.subr.mxu0 0.0
    %1493 = vmatpush1.msra.mxu0 0.0
    %1494 = vmatprep.subr.mxu0 0.0
    %1495 = vmatpush1.msra.mxu0 0.0
    %1496 = vmatprep.subr.mxu0 0.0
    %1497 = vmatpush1.msra.mxu0 0.0
    %1498 = vmatprep.subr.mxu0 0.0
    %1499 = vmatpush1.msra.mxu0 0.0
    %1500 = vmatprep.subr.mxu0 0.0
    %1501 = vmatpush1.msra.mxu0 0.0
    %1502 = vmatprep.subr.mxu0 0.0
    %1503 = vmatpush1.msra.mxu0 0.0
    %1504 = vmatprep.subr.mxu0 0.0
    %1505 = vmatpush1.msra.mxu0 0.0
    %1506 = vmatprep.subr.mxu0 0.0
    %1507 = vmatpush1.msra.mxu0 0.0
    %1508 = vmatprep.subr.mxu0 0.0
    %1509 = vmatpush1.msra.mxu0 0.0
    %1510 = vmatprep.subr.mxu0 0.0
    %1511 = vmatpush1.msra.mxu0 0.0
    %1512 = vmatprep.mubr.f32.mxu0 0.0
    %1513 = vmatmul.mubr.f32.gmra.mrb[0].mxu0 %v1445
    %v1514 = vpop.f32.mrb[0].mxu0
    %v1515 = vadd.f32 0.0, %v1514
    %v1516 = vpop.f32.mrb[0].mxu0
    %1517 = vdwg.mxu0
    %v1518 = vadd.f32 %v1447, %v1515
    %v1519 = vxor.u32 %v1518, 2147483648
    %v1520 = vmul.f32 %v1519, 1.442695
    %v1521 = vpow.pop %v1520
    %v1522 = vadd.f32 %v1521, 1.0
    %v1523 = vrcp.pop %v1522
    %v1524 = vmul.f32 1.0, %v1523
    %v1525 = vtanh.pop %v1518
    %1526 = vrot.lane.b32.xlu0 %v1524, 96
    %v1527 = vpop.permute.xlu0 %1526
    %1528 = vrot.lane.b32.xlu0 %v1525, 64
    %v1529 = vpop.permute.xlu0 %1528
    %1530 = vrot.lane.b32.xlu0 %v1524, 32
    %v1531 = vpop.permute.xlu0 %1530
    %v1532 = vmul.f32 %v1527, %v1443
    %v1533 = vmul.f32 %v1524, %v1529
    %v1534 = vadd.f32 %v1532, %v1533
    %v1535 = vtanh.pop %v1534
    %v1536 = vmul.f32 %v1531, %v1535
    %1537 = vst [vmem:[#allocation3 + $0xe] sm:$0x1] %v1536
    %v1538 = vld [vmem:[#allocation2 + $0xf] sm:$0x1]
    %1539 = vmatprep.subr.mxu0 0.0
    %1540 = vmatpush1.msra.mxu0 %v157
    %1541 = vmatprep.subr.mxu0 0.0
    %1542 = vmatpush1.msra.mxu0 %v158
    %1543 = vmatprep.subr.mxu0 0.0
    %1544 = vmatpush1.msra.mxu0 %v159
    %1545 = vmatprep.subr.mxu0 0.0
    %1546 = vmatpush1.msra.mxu0 %v160
    %1547 = vmatprep.subr.mxu0 0.0
    %1548 = vmatpush1.msra.mxu0 %v161
    %1549 = vmatprep.subr.mxu0 0.0
    %1550 = vmatpush1.msra.mxu0 %v162
    %1551 = vmatprep.subr.mxu0 0.0
    %1552 = vmatpush1.msra.mxu0 %v163
    %1553 = vmatprep.subr.mxu0 0.0
    %1554 = vmatpush1.msra.mxu0 %v164
    %1555 = vmatprep.subr.mxu0 0.0
    %1556 = vmatpush1.msra.mxu0 %v165
    %1557 = vmatprep.subr.mxu0 0.0
    %1558 = vmatpush1.msra.mxu0 %v166
    %1559 = vmatprep.subr.mxu0 0.0
    %1560 = vmatpush1.msra.mxu0 %v167
    %1561 = vmatprep.subr.mxu0 0.0
    %1562 = vmatpush1.msra.mxu0 %v168
    %1563 = vmatprep.subr.mxu0 0.0
    %1564 = vmatpush1.msra.mxu0 %v169
    %1565 = vmatprep.subr.mxu0 0.0
    %1566 = vmatpush1.msra.mxu0 %v170
    %1567 = vmatprep.subr.mxu0 0.0
    %1568 = vmatpush1.msra.mxu0 %v171
    %1569 = vmatprep.subr.mxu0 0.0
    %1570 = vmatpush1.msra.mxu0 %v172
    %1571 = vmatprep.subr.mxu0 0.0
    %1572 = vmatpush1.msra.mxu0 0.0
    %1573 = vmatprep.subr.mxu0 0.0
    %1574 = vmatpush1.msra.mxu0 0.0
    %1575 = vmatprep.subr.mxu0 0.0
    %1576 = vmatpush1.msra.mxu0 0.0
    %1577 = vmatprep.subr.mxu0 0.0
    %1578 = vmatpush1.msra.mxu0 0.0
    %1579 = vmatprep.subr.mxu0 0.0
    %1580 = vmatpush1.msra.mxu0 0.0
    %1581 = vmatprep.subr.mxu0 0.0
    %1582 = vmatpush1.msra.mxu0 0.0
    %1583 = vmatprep.subr.mxu0 0.0
    %1584 = vmatpush1.msra.mxu0 0.0
    %1585 = vmatprep.subr.mxu0 0.0
    %1586 = vmatpush1.msra.mxu0 0.0
    %1587 = vmatprep.subr.mxu0 0.0
    %1588 = vmatpush1.msra.mxu0 0.0
    %1589 = vmatprep.subr.mxu0 0.0
    %1590 = vmatpush1.msra.mxu0 0.0
    %1591 = vmatprep.subr.mxu0 0.0
    %1592 = vmatpush1.msra.mxu0 0.0
    %1593 = vmatprep.subr.mxu0 0.0
    %1594 = vmatpush1.msra.mxu0 0.0
    %1595 = vmatprep.subr.mxu0 0.0
    %1596 = vmatpush1.msra.mxu0 0.0
    %1597 = vmatprep.subr.mxu0 0.0
    %1598 = vmatpush1.msra.mxu0 0.0
    %1599 = vmatprep.subr.mxu0 0.0
    %1600 = vmatpush1.msra.mxu0 0.0
    %1601 = vmatprep.subr.mxu0 0.0
    %1602 = vmatpush1.msra.mxu0 0.0
    %1603 = vmatprep.mubr.f32.mxu0 0.0
    %1604 = vmatmul.mubr.f32.gmra.mrb[0].mxu0 %v1536
    %v1605 = vpop.f32.mrb[0].mxu0
    %v1606 = vadd.f32 0.0, %v1605
    %v1607 = vpop.f32.mrb[0].mxu0
    %1608 = vdwg.mxu0
    %v1609 = vadd.f32 %v1538, %v1606
    %v1610 = vxor.u32 %v1609, 2147483648
    %v1611 = vmul.f32 %v1610, 1.442695
    %v1612 = vpow.pop %v1611
    %v1613 = vadd.f32 %v1612, 1.0
    %v1614 = vrcp.pop %v1613
    %v1615 = vmul.f32 1.0, %v1614
    %v1616 = vtanh.pop %v1609
    %1617 = vrot.lane.b32.xlu0 %v1615, 96
    %v1618 = vpop.permute.xlu0 %1617
    %1619 = vrot.lane.b32.xlu0 %v1616, 64
    %v1620 = vpop.permute.xlu0 %1619
    %1621 = vrot.lane.b32.xlu0 %v1615, 32
    %v1622 = vpop.permute.xlu0 %1621
    %v1623 = vmul.f32 %v1618, %v1534
    %v1624 = vmul.f32 %v1615, %v1620
    %v1625 = vadd.f32 %v1623, %v1624
    %v1626 = vtanh.pop %v1625
    %v1627 = vmul.f32 %v1622, %v1626
    %1628 = vst [vmem:[#allocation3 + $0xf] sm:$0x1] %v1627
    %v1629 = vld [vmem:[#allocation9 + $0x101] sm:$0x1]
    %v1630 = vld [vmem:[#allocation9 + $0x102] sm:$0x1]
    %v1631 = vld [vmem:[#allocation9 + $0x103] sm:$0x1]
    %v1632 = vld [vmem:[#allocation3] sm:$0xff]
    %v1633 = vld [vmem:[#allocation3 + $0x8] sm:$0xff]
    %v1634 = vld [vmem:[#allocation7] sm:$0xff]
    %v1635 = vld [vmem:[#allocation7 + $0x8] sm:$0xff]
    %1636 = vmatprep.subr.mxu0 0.0
    %1637 = vmatpush1.xpose.msra.mxu0 %v1634
    %1638 = vmatprep.subr.mxu0 0.0
    %1639 = vmatpush1.xpose.msra.mxu0 %v1635
    %1640 = vmatprep.subr.mxu0 0.0
    %1641 = vmatpush1.xpose.msra.mxu0 0.0
    %1642 = vmatprep.subr.mxu0 0.0
    %1643 = vmatpush1.xpose.msra.mxu0 0.0
    %1644 = vmatprep.subr.mxu0 0.0
    %1645 = vmatpush1.xpose.msra.mxu0 0.0
    %1646 = vmatprep.subr.mxu0 0.0
    %1647 = vmatpush1.xpose.msra.mxu0 0.0
    %1648 = vmatprep.subr.mxu0 0.0
    %1649 = vmatpush1.xpose.msra.mxu0 0.0
    %1650 = vmatprep.subr.mxu0 0.0
    %1651 = vmatpush1.xpose.msra.mxu0 0.0
    %1652 = vmatprep.subr.mxu0 0.0
    %1653 = vmatpush1.xpose.msra.mxu0 0.0
    %1654 = vmatprep.subr.mxu0 0.0
    %1655 = vmatpush1.xpose.msra.mxu0 0.0
    %1656 = vmatprep.subr.mxu0 0.0
    %1657 = vmatpush1.xpose.msra.mxu0 0.0
    %1658 = vmatprep.subr.mxu0 0.0
    %1659 = vmatpush1.xpose.msra.mxu0 0.0
    %1660 = vmatprep.subr.mxu0 0.0
    %1661 = vmatpush1.xpose.msra.mxu0 0.0
    %1662 = vmatprep.subr.mxu0 0.0
    %1663 = vmatpush1.xpose.msra.mxu0 0.0
    %1664 = vmatprep.subr.mxu0 0.0
    %1665 = vmatpush1.xpose.msra.mxu0 0.0
    %1666 = vmatprep.subr.mxu0 0.0
    %1667 = vmatpush1.xpose.msra.mxu0 0.0
    %1668 = vmatprep.subr.mxu0 0.0
    %1669 = vmatpush1.xpose.msra.mxu0 0.0
    %1670 = vmatprep.subr.mxu0 0.0
    %1671 = vmatpush1.xpose.msra.mxu0 0.0
    %1672 = vmatprep.subr.mxu0 0.0
    %1673 = vmatpush1.xpose.msra.mxu0 0.0
    %1674 = vmatprep.subr.mxu0 0.0
    %1675 = vmatpush1.xpose.msra.mxu0 0.0
    %1676 = vmatprep.subr.mxu0 0.0
    %1677 = vmatpush1.xpose.msra.mxu0 0.0
    %1678 = vmatprep.subr.mxu0 0.0
    %1679 = vmatpush1.xpose.msra.mxu0 0.0
    %1680 = vmatprep.subr.mxu0 0.0
    %1681 = vmatpush1.xpose.msra.mxu0 0.0
    %1682 = vmatprep.subr.mxu0 0.0
    %1683 = vmatpush1.xpose.msra.mxu0 0.0
    %1684 = vmatprep.subr.mxu0 0.0
    %1685 = vmatpush1.xpose.msra.mxu0 0.0
    %1686 = vmatprep.subr.mxu0 0.0
    %1687 = vmatpush1.xpose.msra.mxu0 0.0
    %1688 = vmatprep.subr.mxu0 0.0
    %1689 = vmatpush1.xpose.msra.mxu0 0.0
    %1690 = vmatprep.subr.mxu0 0.0
    %1691 = vmatpush1.xpose.msra.mxu0 0.0
    %1692 = vmatprep.subr.mxu0 0.0
    %1693 = vmatpush1.xpose.msra.mxu0 0.0
    %1694 = vmatprep.subr.mxu0 0.0
    %1695 = vmatpush1.xpose.msra.mxu0 0.0
    %1696 = vmatprep.subr.mxu0 0.0
    %1697 = vmatpush1.xpose.msra.mxu0 0.0
    %1698 = vmatprep.subr.mxu0 0.0
    %1699 = vmatpush1.xpose.msra.mxu0 0.0
    %1700 = vmatprep.mubr.f32.mxu0 0.0
    %1701 = vmatmul.mubr.f32.gmra.mrb[0].mxu0 %v1630
    %v1702 = vpop.f32.mrb[0].mxu0
    %v1703 = vadd.f32 0.0, %v1702
    %v1704 = vpop.f32.mrb[0].mxu0
    %1705 = vdwg.mxu0
    %1706 = vmatprep.subr.mxu0 0.0
    %1707 = vmatpush1.xpose.msra.mxu0 %v1632
    %1708 = vmatprep.subr.mxu0 0.0
    %1709 = vmatpush1.xpose.msra.mxu0 %v1633
    %1710 = vmatprep.subr.mxu0 0.0
    %1711 = vmatpush1.xpose.msra.mxu0 0.0
    %1712 = vmatprep.subr.mxu0 0.0
    %1713 = vmatpush1.xpose.msra.mxu0 0.0
    %1714 = vmatprep.subr.mxu0 0.0
    %1715 = vmatpush1.xpose.msra.mxu0 0.0
    %1716 = vmatprep.subr.mxu0 0.0
    %1717 = vmatpush1.xpose.msra.mxu0 0.0
    %1718 = vmatprep.subr.mxu0 0.0
    %1719 = vmatpush1.xpose.msra.mxu0 0.0
    %1720 = vmatprep.subr.mxu0 0.0
    %1721 = vmatpush1.xpose.msra.mxu0 0.0
    %1722 = vmatprep.subr.mxu0 0.0
    %1723 = vmatpush1.xpose.msra.mxu0 0.0
    %1724 = vmatprep.subr.mxu0 0.0
    %1725 = vmatpush1.xpose.msra.mxu0 0.0
    %1726 = vmatprep.subr.mxu0 0.0
    %1727 = vmatpush1.xpose.msra.mxu0 0.0
    %1728 = vmatprep.subr.mxu0 0.0
    %1729 = vmatpush1.xpose.msra.mxu0 0.0
    %1730 = vmatprep.subr.mxu0 0.0
    %1731 = vmatpush1.xpose.msra.mxu0 0.0
    %1732 = vmatprep.subr.mxu0 0.0
    %1733 = vmatpush1.xpose.msra.mxu0 0.0
    %1734 = vmatprep.subr.mxu0 0.0
    %1735 = vmatpush1.xpose.msra.mxu0 0.0
    %1736 = vmatprep.subr.mxu0 0.0
    %1737 = vmatpush1.xpose.msra.mxu0 0.0
    %1738 = vmatprep.subr.mxu0 0.0
    %1739 = vmatpush1.xpose.msra.mxu0 0.0
    %1740 = vmatprep.subr.mxu0 0.0
    %1741 = vmatpush1.xpose.msra.mxu0 0.0
    %1742 = vmatprep.subr.mxu0 0.0
    %1743 = vmatpush1.xpose.msra.mxu0 0.0
    %1744 = vmatprep.subr.mxu0 0.0
    %1745 = vmatpush1.xpose.msra.mxu0 0.0
    %1746 = vmatprep.subr.mxu0 0.0
    %1747 = vmatpush1.xpose.msra.mxu0 0.0
    %1748 = vmatprep.subr.mxu0 0.0
    %1749 = vmatpush1.xpose.msra.mxu0 0.0
    %1750 = vmatprep.subr.mxu0 0.0
    %1751 = vmatpush1.xpose.msra.mxu0 0.0
    %1752 = vmatprep.subr.mxu0 0.0
    %1753 = vmatpush1.xpose.msra.mxu0 0.0
    %1754 = vmatprep.subr.mxu0 0.0
    %1755 = vmatpush1.xpose.msra.mxu0 0.0
    %1756 = vmatprep.subr.mxu0 0.0
    %1757 = vmatpush1.xpose.msra.mxu0 0.0
    %1758 = vmatprep.subr.mxu0 0.0
    %1759 = vmatpush1.xpose.msra.mxu0 0.0
    %1760 = vmatprep.subr.mxu0 0.0
    %1761 = vmatpush1.xpose.msra.mxu0 0.0
    %1762 = vmatprep.subr.mxu0 0.0
    %1763 = vmatpush1.xpose.msra.mxu0 0.0
    %1764 = vmatprep.subr.mxu0 0.0
    %1765 = vmatpush1.xpose.msra.mxu0 0.0
    %1766 = vmatprep.subr.mxu0 0.0
    %1767 = vmatpush1.xpose.msra.mxu0 0.0
    %1768 = vmatprep.subr.mxu0 0.0
    %1769 = vmatpush1.xpose.msra.mxu0 0.0
    %1770 = vmatprep.mubr.f32.mxu0 0.0
    %1771 = vmatmul.mubr.f32.gmra.mrb[0].mxu0 %v1629
    %v1772 = vpop.f32.mrb[0].mxu0
    %v1773 = vadd.f32 %v1703, %v1772
    %v1774 = vpop.f32.mrb[0].mxu0
    %1775 = vdwg.mxu0
    %1777 = vset.pattern.permute.xlu0 0
    %1778 = vperm.xlu0 %1777, %v1631
    %v1779 = vpop.permute.xlu0 %1778
    %v1781 = vadd.f32 %v1773, %v1779
    %v1782 = vxor.u32 %v1781, 2147483648
    %v1783 = vmul.f32 %v1782, 1.442695
    %v1784 = vpow.pop %v1783
    %v1785 = vadd.f32 %v1784, 1.0
    %v1786 = vrcp.pop %v1785
    %v1787 = vmul.f32 1.0, %v1786
    %vm1788 = vcmask 122880
    %1789 = vst.msk [vmem:[#allocation10] sm:$0x1] %vm1788, %v1787
    // Predicated region
    $region26: #{tpu_custom_call.1} parent=1 // pred_check
      _
    $region27: #{tpu_custom_call.1} parent=1 // pred_check_branch
      %1791 = sbr.rel (0) target = $region29
    $region28: #{tpu_custom_call.1} parent=1 // pred_region
      %s1793 = ssub.s32 16, 16
      %1794 = vsyncadd [#allocation6], %s1793
      %s1796 = sshll.u32 [#allocation10], 4
      %s1797 = int_to_ptr.vmem [resolvable:$true] %s1796
      %1799 = dma.vmem_to_hbm [thread:$0]  %s1797, 16, %s3, [#allocation6]
    $region29: #{tpu_custom_call.1} parent=1 // pred_fallthru
      _
    // Predicated region
    $region30: #{tpu_custom_call.1} parent=1 // pred_check
      _
    $region31: #{tpu_custom_call.1} parent=1 // pred_check_branch
      %1801 = sbr.rel (0) target = $region33
    $region32: #{tpu_custom_call.1} parent=1 // pred_region
      %1802 = dma.done [#allocation6], 16
    $region33: #{tpu_custom_call.1} parent=1 // pred_fallthru
      _
    %1803 = vsyncpa [#allocation5], 1
    %1804 = vsyncpa [#allocation8], 1
    %1805 = vsyncpa [#allocation6], 1

</llo_original>
